<compile_context>
chip_gen: v7x
topology: tpu7x:2x2x1
jax: 0.10.0
libtpu: 0.0.40
codegen_flags: <defaults>
</compile_context>

<pallas_src>
import jax
import jax.numpy as jnp
from jax.experimental import pallas as pl
from jax.experimental.pallas import tpu as pltpu

V_THRESHOLD = 0.5


def _rstdp_kernel(x_ref, w_ref, r_ref, s_ref, dw_ref):
    # x_ref : (B, D_in)        VMEM  (grid-invariant block, fetched once)
    # w_ref : (T_OUT, D_in)    VMEM  (tile of nn.Linear weight, streamed in)
    # r_ref : (1, 1)           SMEM  (scalar reward trace)
    # s_ref : (B, T_OUT)       VMEM  (spike tile, lane-dense)
    # dw_ref: (T_OUT, D_in)    VMEM  (weight-update tile, streamed out)
    x = x_ref[...]
    w = w_ref[...]

    # i_tile = x @ W_tile^T  -> (B, T_OUT)   (MXU, contract over D_in; f32 acc)
    i = jax.lax.dot_general(
        x, w, (((1,), (1,)), ((), ())), preferred_element_type=jnp.float32
    )

    # IF node: spike where the synaptic current crosses the threshold.
    s = (i >= V_THRESHOLD).astype(jnp.float32)
    s_ref[...] = s

    # dw_tile = r * (s^T @ pre_trace); pre_trace == x on the first step.
    # The matmul inputs are cast to the streamed dtype (bf16 path: exact for
    # {0,1}-valued s / x, f32 MXU accumulation); the scalar reward is applied
    # to the f32 result so the rounding order matches the reference r*(s^T@x).
    dw = jax.lax.dot_general(
        s.astype(x.dtype), x, (((0,), (0,)), ((), ())),
        preferred_element_type=jnp.float32,
    )
    dw_ref[...] = dw * r_ref[0, 0]


def _vmem_capacity_bytes():
    """Physical VMEM per core; conservative (v7x = 64 MiB) if the query fails."""
    try:
        cap = getattr(pltpu.get_tpu_info(), "vmem_capacity_bytes", None)
        if cap:
            return int(cap)
    except Exception:
        pass
    return 64 * 1024 * 1024


def _choose_t_out(B, d_out, d_in, *, x_bytes, w_bytes, budget_bytes):
    """Pick the D_out tile size.

    Constraints / preferences:
      * multiple of 128 lanes (unmasked vst on the (B, t) spike tile),
        preferring multiples of 256 (full MXU width on v6e/v7x),
      * as large as the double-buffered VMEM budget allows,
      * capped at d_out // 2 so the grid has >= 2 steps (both v7x TensorCores
        get work and the W-in / dw-out DMA streams pipeline against compute),
      * exact divisors of d_out preferred; otherwise the wrapper zero-pads
        D_out up to a tile multiple (padded rows never spike).
    """
    def vmem_need(t):
        # 2 pipeline buffers per stream:
        #   W tile in (w_bytes) + dw tile out (f32) + s tile out (f32)
        #   + the grid-invariant x block (conservatively counted double-buffered).
        return 2 * (t * d_in * (w_bytes + 4) + B * t * 4 + B * d_in * x_bytes)

    cap = max(128, min(d_out // 2, 2048))
    cands_256 = list(range(256, cap + 1, 256))
    cands_128 = [t for t in range(128, cap + 1, 128) if t % 256 != 0]
    candidates = cands_256 + cands_128

    divisors = [t for t in candidates
                if d_out % t == 0 and vmem_need(t) <= budget_bytes]
    if divisors:
        return max(divisors)
    fitting = [t for t in candidates if vmem_need(t) <= budget_bytes]
    if fitting:
        return max(fitting)               # wrapper pads D_out up to a multiple
    small = min(d_out, 128)
    if vmem_need(small) <= budget_bytes:
        return small
    raise ValueError(
        "RSTDP kernel: no lane-dense D_out tile fits the VMEM budget; "
        "B * D_in is too large for a single-K-block kernel (see TODO on the "
        "D_in grid axis)."
    )


def rstdp_forward(x, w, r, *, t_out=None, use_bf16=True):
    """Single-step RSTDP forward (first call: pre-trace == x, reward trace == r).

    x : (B, D_in)     float32  input spikes / activations
    w : (D_out, D_in) float32  nn.Linear weight
    r : ()            float32  scalar reward

    use_bf16: stream x / W to the MXU in bf16.  Bit-exact w.r.t. the f32
    reference when x is a {0,1} spike tensor and W is bf16-representable;
    set False for arbitrary real-valued x / W.
    """
    B, D_in = x.shape
    D_out, D_in_w = w.shape
    assert D_in_w == D_in, "weight / input feature mismatch"

    in_dtype = jnp.bfloat16 if use_bf16 else jnp.float32
    in_bytes = jnp.dtype(in_dtype).itemsize

    cap = _vmem_capacity_bytes()
    budget = (cap * 3) // 8                 # ~24 MiB on v7x, ~48 MiB on v5e/v6e
    if t_out is None:
        t_out = _choose_t_out(B, D_out, D_in, x_bytes=in_bytes,
                              w_bytes=in_bytes, budget_bytes=budget)

    n_tiles = pl.cdiv(D_out, t_out)
    d_pad = n_tiles * t_out

    xk = x.astype(in_dtype)
    # W kept in the nn.Linear (D_out, D_in) layout for spec fidelity; the
    # contraction over its lane dim is handled by Mosaic (verified clean lowering).
    wk = w.astype(in_dtype)
    if d_pad != D_out:
        # Zero rows -> i = 0 < threshold -> s = 0 -> dw rows = 0; sliced off below.
        wk = jnp.pad(wk, ((0, d_pad - D_out), (0, 0)))
    r2 = jnp.reshape(r.astype(jnp.float32), (1, 1))

    cost = pl.CostEstimate(
        flops=4 * B * D_in * d_pad,         # two matmuls, 2*B*D_in*D_out each
        transcendentals=0,
        bytes_accessed=(in_bytes * B * D_in + in_bytes * d_pad * D_in
                        + 4 * d_pad * D_in + 4 * B * d_pad + 4),
    )

    s, dw = pl.pallas_call(
        _rstdp_kernel,
        grid=(n_tiles,),
        out_shape=(
            jax.ShapeDtypeStruct((B, d_pad), jnp.float32),
            jax.ShapeDtypeStruct((d_pad, D_in), jnp.float32),
        ),
        in_specs=[
            # x: grid-invariant block, fetched once, reused by every tile.
            pl.BlockSpec((B, D_in), lambda j: (0, 0)),
            # W streamed tile-by-tile along D_out.
            pl.BlockSpec((t_out, D_in), lambda j: (j, 0)),
            # Scalar reward trace lives in SMEM.
            pl.BlockSpec(memory_space=pltpu.MemorySpace.SMEM),
        ],
        out_specs=(
            pl.BlockSpec((B, t_out), lambda j: (0, j)),     # spikes, lane-dense
            pl.BlockSpec((t_out, D_in), lambda j: (j, 0)),  # dw streamed out
        ),
        compiler_params=pltpu.CompilerParams(
            dimension_semantics=("parallel",),              # independent D_out tiles
            vmem_limit_bytes=int(min(cap - (8 << 20), max(budget, 32 << 20))),
        ),
        cost_estimate=cost,
    )(xk, wk, r2)

    if d_pad != D_out:
        s = s[:, :D_out]
        dw = dw[:D_out, :]
    return s, dw


def _reference(x, w, r):
    i = jnp.dot(x, w.T, precision=jax.lax.Precision.HIGHEST)
    s = (i >= V_THRESHOLD).astype(jnp.float32)
    dw = jnp.dot(s.T, x, precision=jax.lax.Precision.HIGHEST)
    return s, dw * r


def _make_inputs(key, B, D_in, D_out):
    kx, kw, kr = jax.random.split(key, 3)
    # torch.nn.Linear-style init, quantized to multiples of 2^-10 so W is
    # bf16-exact and both the in-kernel MXU matmul and the f32 XLA reference
    # matmul are exact (-> deterministic spikes at the 0.5 threshold).
    bound = 1.0 / (D_in ** 0.5)
    w_raw = jax.random.uniform(kw, (D_out, D_in), jnp.float32, -bound, bound)
    w = jnp.round(w_raw * 1024.0) / 1024.0
    # Binary spike-like input, as in SNN pipelines (bf16-exact).
    x = (jax.random.uniform(kx, (B, D_in), jnp.float32) > 0.5).astype(jnp.float32)
    r = jax.random.uniform(kr, (), jnp.float32, 0.0, 1.0)
    return x, w, r


if __name__ == "__main__":
    key = jax.random.PRNGKey(0)
    k1, k2 = jax.random.split(key)

    # Main check: MXU-friendly but still small shapes.  B=256 fills the 256-wide
    # MXU (v6e/v7x) as matmul-1's M dim and matmul-2's K dim; D_out=512 gives a
    # 2-step parallel grid (both v7x TensorCores get a tile).
    B, D_in, D_out = 256, 256, 512
    x, w, r = _make_inputs(k1, B, D_in, D_out)

    s, dw = rstdp_forward(x, w, r)                       # bf16 streaming path
    jax.block_until_ready((s, dw))

    s_ref, dw_ref = _reference(x, w, r)
    assert s.shape == (B, D_out) and dw.shape == (D_out, D_in)
    assert bool(jnp.allclose(s, s_ref, atol=1e-6)), "spike mismatch (bf16 path)"
    assert bool(jnp.allclose(dw, dw_ref, rtol=1e-5, atol=1e-5)), "dw mismatch (bf16 path)"

    # Secondary check: non-128-multiple D_out (exercises the zero-pad tail path)
    # and the f32 fallback path.
    B2, D_in2, D_out2 = 16, 128, 200
    x2, w2, r2 = _make_inputs(k2, B2, D_in2, D_out2)
    s2, dw2 = rstdp_forward(x2, w2, r2, use_bf16=False)
    jax.block_until_ready((s2, dw2))
    s2_ref, dw2_ref = _reference(x2, w2, r2)
    assert s2.shape == (B2, D_out2) and dw2.shape == (D_out2, D_in2)
    assert bool(jnp.allclose(s2, s2_ref, atol=1e-6)), "spike mismatch (padded/f32 path)"
    assert bool(jnp.allclose(dw2, dw2_ref, rtol=1e-5, atol=1e-5)), "dw mismatch (padded/f32 path)"

    print("KERNEL_OK")
</pallas_src>

<mosaic_0001>
module attributes {stable_mosaic.version = 11 : i64} {
  func.func @_rstdp_kernel(%arg0: i32, %arg1: memref<256x256xbf16, #tpu.memory_space<vmem>>, %arg2: memref<256x256xbf16, #tpu.memory_space<vmem>>, %arg3: memref<1x1xf32, #tpu.memory_space<smem>>, %arg4: memref<256x256xf32, #tpu.memory_space<vmem>>, %arg5: memref<256x256xf32, #tpu.memory_space<vmem>>) attributes {dimension_semantics = [#tpu.dimension_semantics<parallel>], iteration_bounds = array<i64: 2>, scalar_prefetch = 0 : i64, scratch_operands = 0 : i64, tpu.core_type = #tpu.core_type<tc>, window_params = [{pipeline_mode = #tpu.pipeline_mode<synchronous>, transform_indices = @transform_0, window_bounds = array<i64: 256, 256>}, {transform_indices = @transform_1, window_bounds = array<i64: 256, 256>}, {transform_indices = @transform_2, window_bounds = array<i64: 1, 1>}, {transform_indices = @transform_3, window_bounds = array<i64: 256, 256>}, {transform_indices = @transform_4, window_bounds = array<i64: 256, 256>}]} {
    %c0 = arith.constant 0 : index
    %c0_0 = arith.constant 0 : index
    %0 = vector.load %arg1[%c0, %c0_0] : memref<256x256xbf16, #tpu.memory_space<vmem>>, vector<256x256xbf16>
    %c0_1 = arith.constant 0 : index
    %c0_2 = arith.constant 0 : index
    %1 = vector.load %arg2[%c0_1, %c0_2] : memref<256x256xbf16, #tpu.memory_space<vmem>>, vector<256x256xbf16>
    %cst = arith.constant dense<0.000000e+00> : vector<256x256xf32>
    %2 = tpu.matmul %0, %1, %cst {dimension_numbers = #tpu.dot_dimension_numbers<[1], [1], [0], [0], [0, 0, 1, 0], [], []>} : vector<256x256xbf16>, vector<256x256xbf16>, vector<256x256xf32> -> vector<256x256xf32>
    %cst_3 = arith.constant 5.000000e-01 : f32
    %3 = vector.broadcast %cst_3 : f32 to vector<256x256xf32>
    %4 = arith.cmpf oge, %2, %3 : vector<256x256xf32>
    %5 = arith.extui %4 : vector<256x256xi1> to vector<256x256xi32>
    %6 = arith.sitofp %5 : vector<256x256xi32> to vector<256x256xf32>
    %c0_4 = arith.constant 0 : index
    %c0_5 = arith.constant 0 : index
    %7 = vector.load %arg4[%c0_4, %c0_5] : memref<256x256xf32, #tpu.memory_space<vmem>>, vector<256x256xf32>
    tpu.vector_store %arg4[%c0_4, %c0_5], %6 {strides = array<i32>} : memref<256x256xf32, #tpu.memory_space<vmem>>, vector<256x256xf32>,
    %8 = arith.truncf %6 : vector<256x256xf32> to vector<256x256xbf16>
    %cst_6 = arith.constant dense<0.000000e+00> : vector<256x256xf32>
    %9 = tpu.matmul %8, %0, %cst_6 {dimension_numbers = #tpu.dot_dimension_numbers<[0], [0], [1], [1], [0, 1, 1, 1], [], []>} : vector<256x256xbf16>, vector<256x256xbf16>, vector<256x256xf32> -> vector<256x256xf32>
    %c0_7 = arith.constant 0 : index
    %c0_8 = arith.constant 0 : index
    %10 = memref.load %arg3[%c0_7, %c0_8] : memref<1x1xf32, #tpu.memory_space<smem>>
    %11 = vector.broadcast %10 : f32 to vector<256x256xf32>
    %12 = arith.mulf %9, %11 : vector<256x256xf32>
    %c0_9 = arith.constant 0 : index
    %c0_10 = arith.constant 0 : index
    %13 = vector.load %arg5[%c0_9, %c0_10] : memref<256x256xf32, #tpu.memory_space<vmem>>, vector<256x256xf32>
    tpu.vector_store %arg5[%c0_9, %c0_10], %12 {strides = array<i32>} : memref<256x256xf32, #tpu.memory_space<vmem>>, vector<256x256xf32>,
    return
  }
  func.func @transform_0(%arg0: i32) -> (i32, i32) {
    %c0_i32 = arith.constant 0 : i32
    %c0_i32_0 = arith.constant 0 : i32
    %c0_i32_1 = arith.constant 0 : i32
    return %c0_i32, %c0_i32_0 : i32, i32
  }
  func.func @transform_1(%arg0: i32) -> (i32, i32) {
    %c0_i32 = arith.constant 0 : i32
    %c0_i32_0 = arith.constant 0 : i32
    return %arg0, %c0_i32 : i32, i32
  }
  func.func @transform_2(%arg0: i32) -> (i32, i32) {
    %c0_i32 = arith.constant 0 : i32
    %c0_i32_0 = arith.constant 0 : i32
    %c0_i32_1 = arith.constant 0 : i32
    return %c0_i32, %c0_i32_0 : i32, i32
  }
  func.func @transform_3(%arg0: i32) -> (i32, i32) {
    %c0_i32 = arith.constant 0 : i32
    %c0_i32_0 = arith.constant 0 : i32
    return %c0_i32, %arg0 : i32, i32
  }
  func.func @transform_4(%arg0: i32) -> (i32, i32) {
    %c0_i32 = arith.constant 0 : i32
    %c0_i32_0 = arith.constant 0 : i32
    return %arg0, %c0_i32 : i32, i32
  }
}

</mosaic_0001>

<llo_original>
// kernel: tpu_custom_call.1
$region0: #{tpu_custom_call.1}
  #allocation0 [shape = 'u32[]', space=smem, size = 0x4, offset = 0x4, fixed_abs, tag = 'smem constant byte address 0x4 - core index']
  #allocation1 [shape = 'u32[144,128]{1,0:T(1,128)}', space=vmem, size = 0x12000, scoped, tag = 'internal scratch']
  #allocation2 [shape = 'f32[1,1]{1,0:T(1,128)S(6)}', space=smem, size = 0x200, scoped, tag = 'scoped memory for tpu_custom_call.1']
  %s0 = inlined_call_operand.hbm [shape: bf16[256,256], index: 0, kind: input, shape index: {}]
  %s1 = inlined_call_operand.hbm [shape: bf16[512,256], index: 1, kind: input, shape index: {}]
  %s2 = inlined_call_operand.<no memory space> [shape: f32[1,1], index: 2, kind: input, shape index: {}]
  %s3 = inlined_call_operand.hbm [shape: f32[256,512], index: 3, kind: output, shape index: {0}]
  %s4 = inlined_call_operand.hbm [shape: f32[512,256], index: 4, kind: output, shape index: {1}]
  %5 = xla_tuple %s3, %s4
  %s6 = sld [smem:[#allocation0]]
  $region61: #{tpu_custom_call.1} parent=0
    _
  %s8 = ssub.s32 1, %s6
  %s9 = scalar_select 0, %s8, %s6
  %10 = sst [smem:[#allocation2]] %s2
  $region1: #{tpu_custom_call.1} parent=0
    #allocation3 [shape = 'u8[131072]{0}', space=vmem, size = 0x20000, scoped, tag = 'input window, operand 0, single buffered']
    #allocation4 [shape = 's32[2]{0}', space=sflag, size = 0x8, scoped, tag = 'scoped memory for tpu_custom_call.1']
    #allocation5 [shape = 's32[2]{0}', space=sflag, size = 0x8, scoped, tag = 'scoped memory for tpu_custom_call.1']
    #allocation6 [shape = 'u8[262144]{0}', space=vmem, size = 0x40000, scoped, tag = 'input window, operand 1']
    #allocation7 [shape = 's32[2]{0}', space=sflag, size = 0x8, scoped, tag = 'scoped memory for tpu_custom_call.1']
    #allocation8 [shape = 'u8[524288]{0}', space=vmem, size = 0x80000, scoped, tag = 'output window, operand 0']
    #allocation9 [shape = 'u8[524288]{0}', space=vmem, size = 0x80000, scoped, tag = 'output window, operand 1']
    #allocation10 [shape = 's32[2]{0}', space=sflag, size = 0x8, scoped, tag = 'scoped memory for tpu_custom_call.1']
    %11 = vsyncpa [#allocation4], 0
    %12 = vsyncpa [#allocation7], 0
    %s13 = scalar_lea.sflag [#allocation7], 1
    %14 = vsyncpa %s13, 0
    %15 = vsyncpa [#allocation5], 0
    %s16 = scalar_lea.sflag [#allocation5], 1
    %17 = vsyncpa %s16, 0
    %18 = vsyncpa [#allocation10], 0
    %s19 = scalar_lea.sflag [#allocation10], 1
    %20 = vsyncpa %s19, 0
    loop: start=0, step=1, limit=4
    $region2: #{tpu_custom_call.1} parent=1 // loop_pre_header
      _
    $region3: #{tpu_custom_call.1} parent=1 // loop_header
      %s22 = sphi 0, %s26
      %p23 = scmp.ge.s32.totalorder %s22, 4
      %s30 = sphi 0, %s30
      %s32 = sphi 0, %s30
      %s33 = sphi 0, %s32
      %s47 = sphi 0, %s33
      %s53 = sphi 0, %s55
      %s56 = sphi 0, %s53
      %s57 = sphi 0, %s56
      %s73 = sphi 0, %s57
      %s77 = sphi 0, %s77
      %s79 = sphi 0, %s77
      %s80 = sphi 0, %s79
      %s94 = sphi 0, %s80
      %s100 = sphi 0, %s102
      %s103 = sphi 0, %s100
      %s104 = sphi 0, %s103
      %s120 = sphi 0, %s104
      %s126 = sphi 0, %s128
      %s129 = sphi 0, %s126
      %s130 = sphi 0, %s129
      %s146 = sphi 0, %s130
    $region4: #{tpu_custom_call.1} parent=1 // loop_header_branch
      %25 = sbr.rel (%p23) target = $region8
    $region5: #{tpu_custom_call.1} parent=1 // loop_body
      %s27 = ssub.s32 %s22, 1
      %s28 = ssub.s32 %s22, 2
      %s29 = sadd.s32 %s22, 1
      %s31 = sadd.s32 %s30, 1
      %p34 = scmp.eq.s32.totalorder %s22, 1
      %p35 = scmp.ne.s32.totalorder %s30, %s32
      %p36 = scmp.eq.s32.totalorder %s22, 0
      %p37 = por %p35, %p36
      %p38 = scmp.ne.s32.totalorder %s30, %s32
      %p39 = scmp.eq.s32.totalorder %s27, 1
      %p40 = por %p38, %p39
      %p41 = scmp.ne.s32.totalorder %s32, %s33
      %p42 = scmp.eq.s32.totalorder %s27, 0
      %p43 = por %p41, %p42
      %p44 = scmp.ne.s32.totalorder %s32, %s33
      %p45 = scmp.eq.s32.totalorder %s28, 1
      %p46 = por %p44, %p45
      %p48 = scmp.ne.s32.totalorder %s33, %s47
      %p49 = scmp.eq.s32.totalorder %s28, 0
      %p50 = por %p48, %p49
      %s51 = ssub.s32 %s22, %s29
      %p52 = scmp.eq.s32.totalorder %s51, 0
      %s54 = sadd.s32 %s53, 1
      %s55 = scalar_select %p52, %s53, %s54
      %p58 = pneg %p52
      %p59 = scmp.eq.s32.totalorder %s22, 1
      %p60 = por %p58, %p59
      %p61 = scmp.ne.s32.totalorder %s53, %s56
      %p62 = scmp.eq.s32.totalorder %s22, 0
      %p63 = por %p61, %p62
      %p64 = scmp.ne.s32.totalorder %s53, %s56
      %p65 = scmp.eq.s32.totalorder %s27, 1
      %p66 = por %p64, %p65
      %p67 = scmp.ne.s32.totalorder %s56, %s57
      %p68 = scmp.eq.s32.totalorder %s27, 0
      %p69 = por %p67, %p68
      %p70 = scmp.ne.s32.totalorder %s56, %s57
      %p71 = scmp.eq.s32.totalorder %s28, 1
      %p72 = por %p70, %p71
      %p74 = scmp.ne.s32.totalorder %s57, %s73
      %p75 = scmp.eq.s32.totalorder %s28, 0
      %p76 = por %p74, %p75
      %s78 = sadd.s32 %s77, 1
      %p81 = scmp.eq.s32.totalorder %s22, 1
      %p82 = scmp.ne.s32.totalorder %s77, %s79
      %p83 = scmp.eq.s32.totalorder %s22, 0
      %p84 = por %p82, %p83
      %p85 = scmp.ne.s32.totalorder %s77, %s79
      %p86 = scmp.eq.s32.totalorder %s27, 1
      %p87 = por %p85, %p86
      %p88 = scmp.ne.s32.totalorder %s79, %s80
      %p89 = scmp.eq.s32.totalorder %s27, 0
      %p90 = por %p88, %p89
      %p91 = scmp.ne.s32.totalorder %s79, %s80
      %p92 = scmp.eq.s32.totalorder %s28, 1
      %p93 = por %p91, %p92
      %p95 = scmp.ne.s32.totalorder %s80, %s94
      %p96 = scmp.eq.s32.totalorder %s28, 0
      %p97 = por %p95, %p96
      %s98 = ssub.s32 %s22, %s29
      %p99 = scmp.eq.s32.totalorder %s98, 0
      %s101 = sadd.s32 %s100, 1
      %s102 = scalar_select %p99, %s100, %s101
      %p105 = pneg %p99
      %p106 = scmp.eq.s32.totalorder %s22, 1
      %p107 = por %p105, %p106
      %p108 = scmp.ne.s32.totalorder %s100, %s103
      %p109 = scmp.eq.s32.totalorder %s22, 0
      %p110 = por %p108, %p109
      %p111 = scmp.ne.s32.totalorder %s100, %s103
      %p112 = scmp.eq.s32.totalorder %s27, 1
      %p113 = por %p111, %p112
      %p114 = scmp.ne.s32.totalorder %s103, %s104
      %p115 = scmp.eq.s32.totalorder %s27, 0
      %p116 = por %p114, %p115
      %p117 = scmp.ne.s32.totalorder %s103, %s104
      %p118 = scmp.eq.s32.totalorder %s28, 1
      %p119 = por %p117, %p118
      %p121 = scmp.ne.s32.totalorder %s104, %s120
      %p122 = scmp.eq.s32.totalorder %s28, 0
      %p123 = por %p121, %p122
      %s124 = ssub.s32 %s22, %s29
      %p125 = scmp.eq.s32.totalorder %s124, 0
      %s127 = sadd.s32 %s126, 1
      %s128 = scalar_select %p125, %s126, %s127
      %p131 = pneg %p125
      %p132 = scmp.eq.s32.totalorder %s22, 1
      %p133 = por %p131, %p132
      %p134 = scmp.ne.s32.totalorder %s126, %s129
      %p135 = scmp.eq.s32.totalorder %s22, 0
      %p136 = por %p134, %p135
      %p137 = scmp.ne.s32.totalorder %s126, %s129
      %p138 = scmp.eq.s32.totalorder %s27, 1
      %p139 = por %p137, %p138
      %p140 = scmp.ne.s32.totalorder %s129, %s130
      %p141 = scmp.eq.s32.totalorder %s27, 0
      %p142 = por %p140, %p141
      %p143 = scmp.ne.s32.totalorder %s129, %s130
      %p144 = scmp.eq.s32.totalorder %s28, 1
      %p145 = por %p143, %p144
      %p147 = scmp.ne.s32.totalorder %s130, %s146
      %p148 = scmp.eq.s32.totalorder %s28, 0
      %p149 = por %p147, %p148
      %p150 = scmp.le.s32.totalorder 1, %s22
      %p151 = scmp.lt.s32.totalorder %s22, 3
      %p152 = pnand %p150, %p151
      %p153 = pneg %p152
      // Predicated region
      $region9: #{tpu_custom_call.1} parent=5 // pred_check
        _
      $region10: #{tpu_custom_call.1} parent=5 // pred_check_branch
        %155 = sbr.rel (%p152) target = $region12
      $region11: #{tpu_custom_call.1} parent=5 // pred_region
        %s156 = ssub.s32 %s22, 1
        // Predicated region
        $region13: #{tpu_custom_call.1} parent=11 // pred_check
          %p157 = pneg %p43
        $region14: #{tpu_custom_call.1} parent=11 // pred_check_branch
          %159 = sbr.rel (%p157) target = $region16
        $region15: #{tpu_custom_call.1} parent=11 // pred_region
          %s161 = ssub.s32 4096, 4096
          %162 = vsyncadd [#allocation4], %s161
          %s163 = sshll.u32 [#allocation3], 4
          %s164 = int_to_ptr.vmem [resolvable:$true] %s163
          %169 = dma.hbm_to_vmem [thread:$0]  %s0, 4096, %s164, [#allocation4], 128, 128, 8
        $region16: #{tpu_custom_call.1} parent=11 // pred_fallthru
          _
        // Predicated region
        $region17: #{tpu_custom_call.1} parent=11 // pred_check
          %p170 = pneg %p90
        $region18: #{tpu_custom_call.1} parent=11 // pred_check_branch
          %172 = sbr.rel (%p170) target = $region20
        $region19: #{tpu_custom_call.1} parent=11 // pred_region
          _
        $region20: #{tpu_custom_call.1} parent=11 // pred_fallthru
          _
      $region12: #{tpu_custom_call.1} parent=5 // pred_fallthru
        _
      %p173 = scmp.lt.s32.totalorder %s22, 2
      // Predicated region
      $region21: #{tpu_custom_call.1} parent=5 // pred_check
        %p174 = pneg %p173
      $region22: #{tpu_custom_call.1} parent=5 // pred_check_branch
        %176 = sbr.rel (%p174) target = $region24
      $region23: #{tpu_custom_call.1} parent=5 // pred_region
        // Predicated region
        $region25: #{tpu_custom_call.1} parent=23 // pred_check
          %p177 = pneg %p63
        $region26: #{tpu_custom_call.1} parent=23 // pred_check_branch
          %179 = sbr.rel (%p177) target = $region28
        $region27: #{tpu_custom_call.1} parent=23 // pred_region
          %s180 = sand.u32 %s53, 1
          %s181 = scalar_lea.sflag [#allocation7], %s180
          %s182 = sand.u32 %s53, 1
          %s183 = smul.addr %s182, 256
          %s184 = scalar_lea.vmem [#allocation6], %s183
          %s185 = smul.u32 32, %s22
          %s187 = ssub.s32 4096, 4096
          %188 = vsyncadd %s181, %s187
          %s189 = smul.addr %s185, 2
          %s190 = smul.addr %s189, 64
          %s191 = scalar_lea.hbm %s1, %s190
          %s192 = sshll.u32 %s184, 4
          %s193 = int_to_ptr.vmem [resolvable:$true] %s192
          %198 = dma.hbm_to_vmem [thread:$0]  %s191, 4096, %s193, %s181, 128, 128, 8
        $region28: #{tpu_custom_call.1} parent=23 // pred_fallthru
          _
      $region24: #{tpu_custom_call.1} parent=5 // pred_fallthru
        _
      %p199 = scmp.le.s32.totalorder 1, %s22
      %p200 = scmp.lt.s32.totalorder %s22, 3
      %p201 = pnand %p199, %p200
      %p202 = pneg %p201
      // Predicated region
      $region29: #{tpu_custom_call.1} parent=5 // pred_check
        _
      $region30: #{tpu_custom_call.1} parent=5 // pred_check_branch
        %204 = sbr.rel (%p201) target = $region32
      $region31: #{tpu_custom_call.1} parent=5 // pred_region
        %s205 = ssub.s32 %s22, 1
        // Predicated region
        $region33: #{tpu_custom_call.1} parent=31 // pred_check
          %p206 = pneg %p43
        $region34: #{tpu_custom_call.1} parent=31 // pred_check_branch
          %208 = sbr.rel (%p206) target = $region36
        $region35: #{tpu_custom_call.1} parent=31 // pred_region
          %209 = dma.done [#allocation4], 4096
        $region36: #{tpu_custom_call.1} parent=31 // pred_fallthru
          _
        %s210 = sand.u32 %s56, 1
        %s211 = scalar_lea.sflag [#allocation7], %s210
        %s212 = sand.u32 %s56, 1
        %s213 = smul.addr %s212, 256
        %s214 = scalar_lea.vmem [#allocation6], %s213
        // Predicated region
        $region37: #{tpu_custom_call.1} parent=31 // pred_check
          %p215 = pneg %p69
        $region38: #{tpu_custom_call.1} parent=31 // pred_check_branch
          %217 = sbr.rel (%p215) target = $region40
        $region39: #{tpu_custom_call.1} parent=31 // pred_region
          %218 = dma.done %s211, 4096
        $region40: #{tpu_custom_call.1} parent=31 // pred_fallthru
          _
        %p219 = pneg %p43
        %p220 = pneg %p40
        %s221 = sand.u32 %s56, 1
        %s222 = scalar_lea.sflag [#allocation7], %s221
        %s223 = sand.u32 %s56, 1
        %s224 = smul.addr %s223, 256
        %s225 = scalar_lea.vmem [#allocation6], %s224
        %p226 = pneg %p69
        %p227 = pneg %p66
        %p228 = pneg %p90
        %p229 = pneg %p87
        %p230 = pneg %p116
        %p231 = pneg %p113
        %s232 = sand.u32 %s103, 1
        %s233 = scalar_lea.sflag [#allocation5], %s232
        %s234 = sand.u32 %s103, 1
        %s235 = smul.addr %s234, 512
        %s236 = scalar_lea.vmem [#allocation8], %s235
        %p237 = pneg %p142
        %p238 = pneg %p139
        %s239 = sand.u32 %s129, 1
        %s240 = scalar_lea.sflag [#allocation10], %s239
        %s241 = sand.u32 %s129, 1
        %s242 = smul.addr %s241, 512
        %s243 = scalar_lea.vmem [#allocation9], %s242
        %s244 = smul.u32 32, %s27
        %s245 = smul.u32 2, %s27
        %s246 = smul.u32 32, %s27
        %v247 = vld [vmem:[#allocation3] sm:$0xff]
        %v248 = vld [vmem:[#allocation3 + $0x8] sm:$0xff]
        %v249 = vld [vmem:[#allocation3 + $0x10] sm:$0xff]
        %v250 = vld [vmem:[#allocation3 + $0x18] sm:$0xff]
        %v251 = vld [vmem:[#allocation3 + $0x20] sm:$0xff]
        %v252 = vld [vmem:[#allocation3 + $0x28] sm:$0xff]
        %v253 = vld [vmem:[#allocation3 + $0x30] sm:$0xff]
        %v254 = vld [vmem:[#allocation3 + $0x38] sm:$0xff]
        %v255 = vld [vmem:[#allocation3 + $0x40] sm:$0xff]
        %v256 = vld [vmem:[#allocation3 + $0x48] sm:$0xff]
        %v257 = vld [vmem:[#allocation3 + $0x50] sm:$0xff]
        %v258 = vld [vmem:[#allocation3 + $0x58] sm:$0xff]
        %v259 = vld [vmem:[#allocation3 + $0x60] sm:$0xff]
        %v260 = vld [vmem:[#allocation3 + $0x68] sm:$0xff]
        %v261 = vld [vmem:[#allocation3 + $0x70] sm:$0xff]
        %v262 = vld [vmem:[#allocation3 + $0x78] sm:$0xff]
        %v263 = vld [vmem:[#allocation3 + $0x80] sm:$0xff]
        %v264 = vld [vmem:[#allocation3 + $0x88] sm:$0xff]
        %v265 = vld [vmem:[#allocation3 + $0x90] sm:$0xff]
        %v266 = vld [vmem:[#allocation3 + $0x98] sm:$0xff]
        %v267 = vld [vmem:[#allocation3 + $0xa0] sm:$0xff]
        %v268 = vld [vmem:[#allocation3 + $0xa8] sm:$0xff]
        %v269 = vld [vmem:[#allocation3 + $0xb0] sm:$0xff]
        %v270 = vld [vmem:[#allocation3 + $0xb8] sm:$0xff]
        %v271 = vld [vmem:[#allocation3 + $0xc0] sm:$0xff]
        %v272 = vld [vmem:[#allocation3 + $0xc8] sm:$0xff]
        %v273 = vld [vmem:[#allocation3 + $0xd0] sm:$0xff]
        %v274 = vld [vmem:[#allocation3 + $0xd8] sm:$0xff]
        %v275 = vld [vmem:[#allocation3 + $0xe0] sm:$0xff]
        %v276 = vld [vmem:[#allocation3 + $0xe8] sm:$0xff]
        %v277 = vld [vmem:[#allocation3 + $0xf0] sm:$0xff]
        %v278 = vld [vmem:[#allocation3 + $0xf8] sm:$0xff]
        %v279 = vld [vmem:[%s214] sm:$0xff]
        %v280 = vld [vmem:[%s214 + $0x8] sm:$0xff]
        %v281 = vld [vmem:[%s214 + $0x10] sm:$0xff]
        %v282 = vld [vmem:[%s214 + $0x18] sm:$0xff]
        %v283 = vld [vmem:[%s214 + $0x20] sm:$0xff]
        %v284 = vld [vmem:[%s214 + $0x28] sm:$0xff]
        %v285 = vld [vmem:[%s214 + $0x30] sm:$0xff]
        %v286 = vld [vmem:[%s214 + $0x38] sm:$0xff]
        %v287 = vld [vmem:[%s214 + $0x40] sm:$0xff]
        %v288 = vld [vmem:[%s214 + $0x48] sm:$0xff]
        %v289 = vld [vmem:[%s214 + $0x50] sm:$0xff]
        %v290 = vld [vmem:[%s214 + $0x58] sm:$0xff]
        %v291 = vld [vmem:[%s214 + $0x60] sm:$0xff]
        %v292 = vld [vmem:[%s214 + $0x68] sm:$0xff]
        %v293 = vld [vmem:[%s214 + $0x70] sm:$0xff]
        %v294 = vld [vmem:[%s214 + $0x78] sm:$0xff]
        %v295 = vld [vmem:[%s214 + $0x80] sm:$0xff]
        %v296 = vld [vmem:[%s214 + $0x88] sm:$0xff]
        %v297 = vld [vmem:[%s214 + $0x90] sm:$0xff]
        %v298 = vld [vmem:[%s214 + $0x98] sm:$0xff]
        %v299 = vld [vmem:[%s214 + $0xa0] sm:$0xff]
        %v300 = vld [vmem:[%s214 + $0xa8] sm:$0xff]
        %v301 = vld [vmem:[%s214 + $0xb0] sm:$0xff]
        %v302 = vld [vmem:[%s214 + $0xb8] sm:$0xff]
        %v303 = vld [vmem:[%s214 + $0xc0] sm:$0xff]
        %v304 = vld [vmem:[%s214 + $0xc8] sm:$0xff]
        %v305 = vld [vmem:[%s214 + $0xd0] sm:$0xff]
        %v306 = vld [vmem:[%s214 + $0xd8] sm:$0xff]
        %v307 = vld [vmem:[%s214 + $0xe0] sm:$0xff]
        %v308 = vld [vmem:[%s214 + $0xe8] sm:$0xff]
        %v309 = vld [vmem:[%s214 + $0xf0] sm:$0xff]
        %v310 = vld [vmem:[%s214 + $0xf8] sm:$0xff]
        %v343 = vunpack.c.l.b16 %v247
        %v344 = vunpack.c.h.b16 %v247
        %v345 = vunpack.c.l.b16 %v248
        %v346 = vunpack.c.h.b16 %v248
        %v347 = vunpack.c.l.b16 %v249
        %v348 = vunpack.c.h.b16 %v249
        %v349 = vunpack.c.l.b16 %v250
        %v350 = vunpack.c.h.b16 %v250
        %v351 = vunpack.c.l.b16 %v251
        %v352 = vunpack.c.h.b16 %v251
        %v353 = vunpack.c.l.b16 %v252
        %v354 = vunpack.c.h.b16 %v252
        %v355 = vunpack.c.l.b16 %v253
        %v356 = vunpack.c.h.b16 %v253
        %v357 = vunpack.c.l.b16 %v254
        %v358 = vunpack.c.h.b16 %v254
        %v359 = vunpack.c.l.b16 %v255
        %v360 = vunpack.c.h.b16 %v255
        %v361 = vunpack.c.l.b16 %v256
        %v362 = vunpack.c.h.b16 %v256
        %v363 = vunpack.c.l.b16 %v257
        %v364 = vunpack.c.h.b16 %v257
        %v365 = vunpack.c.l.b16 %v258
        %v366 = vunpack.c.h.b16 %v258
        %v367 = vunpack.c.l.b16 %v259
        %v368 = vunpack.c.h.b16 %v259
        %v369 = vunpack.c.l.b16 %v260
        %v370 = vunpack.c.h.b16 %v260
        %v371 = vunpack.c.l.b16 %v261
        %v372 = vunpack.c.h.b16 %v261
        %v373 = vunpack.c.l.b16 %v262
        %v374 = vunpack.c.h.b16 %v262
        %v375 = vunpack.c.l.b16 %v263
        %v376 = vunpack.c.h.b16 %v263
        %v377 = vunpack.c.l.b16 %v264
        %v378 = vunpack.c.h.b16 %v264
        %v379 = vunpack.c.l.b16 %v265
        %v380 = vunpack.c.h.b16 %v265
        %v381 = vunpack.c.l.b16 %v266
        %v382 = vunpack.c.h.b16 %v266
        %v383 = vunpack.c.l.b16 %v267
        %v384 = vunpack.c.h.b16 %v267
        %v385 = vunpack.c.l.b16 %v268
        %v386 = vunpack.c.h.b16 %v268
        %v387 = vunpack.c.l.b16 %v269
        %v388 = vunpack.c.h.b16 %v269
        %v389 = vunpack.c.l.b16 %v270
        %v390 = vunpack.c.h.b16 %v270
        %v391 = vunpack.c.l.b16 %v271
        %v392 = vunpack.c.h.b16 %v271
        %v393 = vunpack.c.l.b16 %v272
        %v394 = vunpack.c.h.b16 %v272
        %v395 = vunpack.c.l.b16 %v273
        %v396 = vunpack.c.h.b16 %v273
        %v397 = vunpack.c.l.b16 %v274
        %v398 = vunpack.c.h.b16 %v274
        %v399 = vunpack.c.l.b16 %v275
        %v400 = vunpack.c.h.b16 %v275
        %v401 = vunpack.c.l.b16 %v276
        %v402 = vunpack.c.h.b16 %v276
        %v403 = vunpack.c.l.b16 %v277
        %v404 = vunpack.c.h.b16 %v277
        %v405 = vunpack.c.l.b16 %v278
        %v406 = vunpack.c.h.b16 %v278
        %v407 = vpack.c.b16 %v345, %v343
        %v408 = vpack.c.b16 %v346, %v344
        %v409 = vpack.c.b16 %v349, %v347
        %v410 = vpack.c.b16 %v350, %v348
        %v411 = vpack.c.b16 %v353, %v351
        %v412 = vpack.c.b16 %v354, %v352
        %v413 = vpack.c.b16 %v357, %v355
        %v414 = vpack.c.b16 %v358, %v356
        %v415 = vpack.c.b16 %v361, %v359
        %v416 = vpack.c.b16 %v362, %v360
        %v417 = vpack.c.b16 %v365, %v363
        %v418 = vpack.c.b16 %v366, %v364
        %v419 = vpack.c.b16 %v369, %v367
        %v420 = vpack.c.b16 %v370, %v368
        %v421 = vpack.c.b16 %v373, %v371
        %v422 = vpack.c.b16 %v374, %v372
        %v423 = vpack.c.b16 %v377, %v375
        %v424 = vpack.c.b16 %v378, %v376
        %v425 = vpack.c.b16 %v381, %v379
        %v426 = vpack.c.b16 %v382, %v380
        %v427 = vpack.c.b16 %v385, %v383
        %v428 = vpack.c.b16 %v386, %v384
        %v429 = vpack.c.b16 %v389, %v387
        %v430 = vpack.c.b16 %v390, %v388
        %v431 = vpack.c.b16 %v393, %v391
        %v432 = vpack.c.b16 %v394, %v392
        %v433 = vpack.c.b16 %v397, %v395
        %v434 = vpack.c.b16 %v398, %v396
        %v435 = vpack.c.b16 %v401, %v399
        %v436 = vpack.c.b16 %v402, %v400
        %v437 = vpack.c.b16 %v405, %v403
        %v438 = vpack.c.b16 %v406, %v404
        %v503 = vunpack.c.l.b16 %v279
        %v504 = vunpack.c.h.b16 %v279
        %v505 = vunpack.c.l.b16 %v280
        %v506 = vunpack.c.h.b16 %v280
        %v507 = vunpack.c.l.b16 %v281
        %v508 = vunpack.c.h.b16 %v281
        %v509 = vunpack.c.l.b16 %v282
        %v510 = vunpack.c.h.b16 %v282
        %v511 = vunpack.c.l.b16 %v283
        %v512 = vunpack.c.h.b16 %v283
        %v513 = vunpack.c.l.b16 %v284
        %v514 = vunpack.c.h.b16 %v284
        %v515 = vunpack.c.l.b16 %v285
        %v516 = vunpack.c.h.b16 %v285
        %v517 = vunpack.c.l.b16 %v286
        %v518 = vunpack.c.h.b16 %v286
        %v519 = vunpack.c.l.b16 %v287
        %v520 = vunpack.c.h.b16 %v287
        %v521 = vunpack.c.l.b16 %v288
        %v522 = vunpack.c.h.b16 %v288
        %v523 = vunpack.c.l.b16 %v289
        %v524 = vunpack.c.h.b16 %v289
        %v525 = vunpack.c.l.b16 %v290
        %v526 = vunpack.c.h.b16 %v290
        %v527 = vunpack.c.l.b16 %v291
        %v528 = vunpack.c.h.b16 %v291
        %v529 = vunpack.c.l.b16 %v292
        %v530 = vunpack.c.h.b16 %v292
        %v531 = vunpack.c.l.b16 %v293
        %v532 = vunpack.c.h.b16 %v293
        %v533 = vunpack.c.l.b16 %v294
        %v534 = vunpack.c.h.b16 %v294
        %v535 = vunpack.c.l.b16 %v295
        %v536 = vunpack.c.h.b16 %v295
        %v537 = vunpack.c.l.b16 %v296
        %v538 = vunpack.c.h.b16 %v296
        %v539 = vunpack.c.l.b16 %v297
        %v540 = vunpack.c.h.b16 %v297
        %v541 = vunpack.c.l.b16 %v298
        %v542 = vunpack.c.h.b16 %v298
        %v543 = vunpack.c.l.b16 %v299
        %v544 = vunpack.c.h.b16 %v299
        %v545 = vunpack.c.l.b16 %v300
        %v546 = vunpack.c.h.b16 %v300
        %v547 = vunpack.c.l.b16 %v301
        %v548 = vunpack.c.h.b16 %v301
        %v549 = vunpack.c.l.b16 %v302
        %v550 = vunpack.c.h.b16 %v302
        %v551 = vunpack.c.l.b16 %v303
        %v552 = vunpack.c.h.b16 %v303
        %v553 = vunpack.c.l.b16 %v304
        %v554 = vunpack.c.h.b16 %v304
        %v555 = vunpack.c.l.b16 %v305
        %v556 = vunpack.c.h.b16 %v305
        %v557 = vunpack.c.l.b16 %v306
        %v558 = vunpack.c.h.b16 %v306
        %v559 = vunpack.c.l.b16 %v307
        %v560 = vunpack.c.h.b16 %v307
        %v561 = vunpack.c.l.b16 %v308
        %v562 = vunpack.c.h.b16 %v308
        %v563 = vunpack.c.l.b16 %v309
        %v564 = vunpack.c.h.b16 %v309
        %v565 = vunpack.c.l.b16 %v310
        %v566 = vunpack.c.h.b16 %v310
        %v567 = vpack.c.b16 %v505, %v503
        %v568 = vpack.c.b16 %v506, %v504
        %v569 = vpack.c.b16 %v509, %v507
        %v570 = vpack.c.b16 %v510, %v508
        %v571 = vpack.c.b16 %v513, %v511
        %v572 = vpack.c.b16 %v514, %v512
        %v573 = vpack.c.b16 %v517, %v515
        %v574 = vpack.c.b16 %v518, %v516
        %v575 = vpack.c.b16 %v521, %v519
        %v576 = vpack.c.b16 %v522, %v520
        %v577 = vpack.c.b16 %v525, %v523
        %v578 = vpack.c.b16 %v526, %v524
        %v579 = vpack.c.b16 %v529, %v527
        %v580 = vpack.c.b16 %v530, %v528
        %v581 = vpack.c.b16 %v533, %v531
        %v582 = vpack.c.b16 %v534, %v532
        %v583 = vpack.c.b16 %v537, %v535
        %v584 = vpack.c.b16 %v538, %v536
        %v585 = vpack.c.b16 %v541, %v539
        %v586 = vpack.c.b16 %v542, %v540
        %v587 = vpack.c.b16 %v545, %v543
        %v588 = vpack.c.b16 %v546, %v544
        %v589 = vpack.c.b16 %v549, %v547
        %v590 = vpack.c.b16 %v550, %v548
        %v591 = vpack.c.b16 %v553, %v551
        %v592 = vpack.c.b16 %v554, %v552
        %v593 = vpack.c.b16 %v557, %v555
        %v594 = vpack.c.b16 %v558, %v556
        %v595 = vpack.c.b16 %v561, %v559
        %v596 = vpack.c.b16 %v562, %v560
        %v597 = vpack.c.b16 %v565, %v563
        %v598 = vpack.c.b16 %v566, %v564
        %631 = vmatprep.subr.bf16.mxu0 %v568
        %632 = vmatpush1.bf16.xpose.msra.mxu0 %v567
        %633 = vmatprep.subr.bf16.mxu0 %v570
        %634 = vmatpush1.bf16.xpose.msra.mxu0 %v569
        %635 = vmatprep.subr.bf16.mxu0 %v572
        %636 = vmatpush1.bf16.xpose.msra.mxu0 %v571
        %637 = vmatprep.subr.bf16.mxu0 %v574
        %638 = vmatpush1.bf16.xpose.msra.mxu0 %v573
        %639 = vmatprep.subr.bf16.mxu0 %v576
        %640 = vmatpush1.bf16.xpose.msra.mxu0 %v575
        %641 = vmatprep.subr.bf16.mxu0 %v578
        %642 = vmatpush1.bf16.xpose.msra.mxu0 %v577
        %643 = vmatprep.subr.bf16.mxu0 %v580
        %644 = vmatpush1.bf16.xpose.msra.mxu0 %v579
        %645 = vmatprep.subr.bf16.mxu0 %v582
        %646 = vmatpush1.bf16.xpose.msra.mxu0 %v581
        %647 = vmatprep.subr.bf16.mxu0 %v584
        %648 = vmatpush1.bf16.xpose.msra.mxu0 %v583
        %649 = vmatprep.subr.bf16.mxu0 %v586
        %650 = vmatpush1.bf16.xpose.msra.mxu0 %v585
        %651 = vmatprep.subr.bf16.mxu0 %v588
        %652 = vmatpush1.bf16.xpose.msra.mxu0 %v587
        %653 = vmatprep.subr.bf16.mxu0 %v590
        %654 = vmatpush1.bf16.xpose.msra.mxu0 %v589
        %655 = vmatprep.subr.bf16.mxu0 %v592
        %656 = vmatpush1.bf16.xpose.msra.mxu0 %v591
        %657 = vmatprep.subr.bf16.mxu0 %v594
        %658 = vmatpush1.bf16.xpose.msra.mxu0 %v593
        %659 = vmatprep.subr.bf16.mxu0 %v596
        %660 = vmatpush1.bf16.xpose.msra.mxu0 %v595
        %661 = vmatprep.subr.bf16.mxu0 %v598
        %662 = vmatpush1.bf16.xpose.msra.mxu0 %v597
        %663 = vmatprep.mubr.bf16.mxu0 %v408
        %664 = vmatmul.mubr.bf16.gmra.mrb[0].mxu0 %v407
        %v665 = vpop.f32.mrb[0].mxu0
        %v666 = vadd.f32 0.0, %v665
        %v667 = vpop.f32.mrb[0].mxu0
        %v668 = vadd.f32 0.0, %v667
        %v669 = vpop.f32.mrb[0].mxu0
        %v670 = vadd.f32 0.0, %v669
        %v671 = vpop.f32.mrb[0].mxu0
        %v672 = vadd.f32 0.0, %v671
        %673 = vmatprep.mubr.bf16.mxu0 %v410
        %674 = vmatmul.mubr.bf16.gmra.mrb[0].mxu0 %v409
        %v675 = vpop.f32.mrb[0].mxu0
        %v676 = vadd.f32 0.0, %v675
        %v677 = vpop.f32.mrb[0].mxu0
        %v678 = vadd.f32 0.0, %v677
        %v679 = vpop.f32.mrb[0].mxu0
        %v680 = vadd.f32 0.0, %v679
        %v681 = vpop.f32.mrb[0].mxu0
        %v682 = vadd.f32 0.0, %v681
        %683 = vmatprep.mubr.bf16.mxu0 %v412
        %684 = vmatmul.mubr.bf16.gmra.mrb[0].mxu0 %v411
        %v685 = vpop.f32.mrb[0].mxu0
        %v686 = vadd.f32 0.0, %v685
        %v687 = vpop.f32.mrb[0].mxu0
        %v688 = vadd.f32 0.0, %v687
        %v689 = vpop.f32.mrb[0].mxu0
        %v690 = vadd.f32 0.0, %v689
        %v691 = vpop.f32.mrb[0].mxu0
        %v692 = vadd.f32 0.0, %v691
        %693 = vmatprep.mubr.bf16.mxu0 %v414
        %694 = vmatmul.mubr.bf16.gmra.mrb[0].mxu0 %v413
        %v695 = vpop.f32.mrb[0].mxu0
        %v696 = vadd.f32 0.0, %v695
        %v697 = vpop.f32.mrb[0].mxu0
        %v698 = vadd.f32 0.0, %v697
        %v699 = vpop.f32.mrb[0].mxu0
        %v700 = vadd.f32 0.0, %v699
        %v701 = vpop.f32.mrb[0].mxu0
        %v702 = vadd.f32 0.0, %v701
        %703 = vmatprep.mubr.bf16.mxu0 %v416
        %704 = vmatmul.mubr.bf16.gmra.mrb[0].mxu0 %v415
        %v705 = vpop.f32.mrb[0].mxu0
        %v706 = vadd.f32 0.0, %v705
        %v707 = vpop.f32.mrb[0].mxu0
        %v708 = vadd.f32 0.0, %v707
        %v709 = vpop.f32.mrb[0].mxu0
        %v710 = vadd.f32 0.0, %v709
        %v711 = vpop.f32.mrb[0].mxu0
        %v712 = vadd.f32 0.0, %v711
        %713 = vmatprep.mubr.bf16.mxu0 %v418
        %714 = vmatmul.mubr.bf16.gmra.mrb[0].mxu0 %v417
        %v715 = vpop.f32.mrb[0].mxu0
        %v716 = vadd.f32 0.0, %v715
        %v717 = vpop.f32.mrb[0].mxu0
        %v718 = vadd.f32 0.0, %v717
        %v719 = vpop.f32.mrb[0].mxu0
        %v720 = vadd.f32 0.0, %v719
        %v721 = vpop.f32.mrb[0].mxu0
        %v722 = vadd.f32 0.0, %v721
        %723 = vmatprep.mubr.bf16.mxu0 %v420
        %724 = vmatmul.mubr.bf16.gmra.mrb[0].mxu0 %v419
        %v725 = vpop.f32.mrb[0].mxu0
        %v726 = vadd.f32 0.0, %v725
        %v727 = vpop.f32.mrb[0].mxu0
        %v728 = vadd.f32 0.0, %v727
        %v729 = vpop.f32.mrb[0].mxu0
        %v730 = vadd.f32 0.0, %v729
        %v731 = vpop.f32.mrb[0].mxu0
        %v732 = vadd.f32 0.0, %v731
        %733 = vmatprep.mubr.bf16.mxu0 %v422
        %734 = vmatmul.mubr.bf16.gmra.mrb[0].mxu0 %v421
        %v735 = vpop.f32.mrb[0].mxu0
        %v736 = vadd.f32 0.0, %v735
        %v737 = vpop.f32.mrb[0].mxu0
        %v738 = vadd.f32 0.0, %v737
        %v739 = vpop.f32.mrb[0].mxu0
        %v740 = vadd.f32 0.0, %v739
        %v741 = vpop.f32.mrb[0].mxu0
        %v742 = vadd.f32 0.0, %v741
        %743 = vmatprep.mubr.bf16.mxu0 %v424
        %744 = vmatmul.mubr.bf16.gmra.mrb[0].mxu0 %v423
        %v745 = vpop.f32.mrb[0].mxu0
        %v746 = vadd.f32 0.0, %v745
        %v747 = vpop.f32.mrb[0].mxu0
        %v748 = vadd.f32 0.0, %v747
        %v749 = vpop.f32.mrb[0].mxu0
        %v750 = vadd.f32 0.0, %v749
        %v751 = vpop.f32.mrb[0].mxu0
        %v752 = vadd.f32 0.0, %v751
        %753 = vmatprep.mubr.bf16.mxu0 %v426
        %754 = vmatmul.mubr.bf16.gmra.mrb[0].mxu0 %v425
        %v755 = vpop.f32.mrb[0].mxu0
        %v756 = vadd.f32 0.0, %v755
        %v757 = vpop.f32.mrb[0].mxu0
        %v758 = vadd.f32 0.0, %v757
        %v759 = vpop.f32.mrb[0].mxu0
        %v760 = vadd.f32 0.0, %v759
        %v761 = vpop.f32.mrb[0].mxu0
        %v762 = vadd.f32 0.0, %v761
        %763 = vmatprep.mubr.bf16.mxu0 %v428
        %764 = vmatmul.mubr.bf16.gmra.mrb[0].mxu0 %v427
        %v765 = vpop.f32.mrb[0].mxu0
        %v766 = vadd.f32 0.0, %v765
        %v767 = vpop.f32.mrb[0].mxu0
        %v768 = vadd.f32 0.0, %v767
        %v769 = vpop.f32.mrb[0].mxu0
        %v770 = vadd.f32 0.0, %v769
        %v771 = vpop.f32.mrb[0].mxu0
        %v772 = vadd.f32 0.0, %v771
        %773 = vmatprep.mubr.bf16.mxu0 %v430
        %774 = vmatmul.mubr.bf16.gmra.mrb[0].mxu0 %v429
        %v775 = vpop.f32.mrb[0].mxu0
        %v776 = vadd.f32 0.0, %v775
        %v777 = vpop.f32.mrb[0].mxu0
        %v778 = vadd.f32 0.0, %v777
        %v779 = vpop.f32.mrb[0].mxu0
        %v780 = vadd.f32 0.0, %v779
        %v781 = vpop.f32.mrb[0].mxu0
        %v782 = vadd.f32 0.0, %v781
        %783 = vmatprep.mubr.bf16.mxu0 %v432
        %784 = vmatmul.mubr.bf16.gmra.mrb[0].mxu0 %v431
        %v785 = vpop.f32.mrb[0].mxu0
        %v786 = vadd.f32 0.0, %v785
        %v787 = vpop.f32.mrb[0].mxu0
        %v788 = vadd.f32 0.0, %v787
        %v789 = vpop.f32.mrb[0].mxu0
        %v790 = vadd.f32 0.0, %v789
        %v791 = vpop.f32.mrb[0].mxu0
        %v792 = vadd.f32 0.0, %v791
        %793 = vmatprep.mubr.bf16.mxu0 %v434
        %794 = vmatmul.mubr.bf16.gmra.mrb[0].mxu0 %v433
        %v795 = vpop.f32.mrb[0].mxu0
        %v796 = vadd.f32 0.0, %v795
        %v797 = vpop.f32.mrb[0].mxu0
        %v798 = vadd.f32 0.0, %v797
        %v799 = vpop.f32.mrb[0].mxu0
        %v800 = vadd.f32 0.0, %v799
        %v801 = vpop.f32.mrb[0].mxu0
        %v802 = vadd.f32 0.0, %v801
        %803 = vmatprep.mubr.bf16.mxu0 %v436
        %804 = vmatmul.mubr.bf16.gmra.mrb[0].mxu0 %v435
        %v805 = vpop.f32.mrb[0].mxu0
        %v806 = vadd.f32 0.0, %v805
        %v807 = vpop.f32.mrb[0].mxu0
        %v808 = vadd.f32 0.0, %v807
        %v809 = vpop.f32.mrb[0].mxu0
        %v810 = vadd.f32 0.0, %v809
        %v811 = vpop.f32.mrb[0].mxu0
        %v812 = vadd.f32 0.0, %v811
        %813 = vmatprep.mubr.bf16.mxu0 %v438
        %814 = vmatmul.mubr.bf16.gmra.mrb[0].mxu0 %v437
        %v815 = vpop.f32.mrb[0].mxu0
        %v816 = vadd.f32 0.0, %v815
        %v817 = vpop.f32.mrb[0].mxu0
        %v818 = vadd.f32 0.0, %v817
        %v819 = vpop.f32.mrb[0].mxu0
        %v820 = vadd.f32 0.0, %v819
        %v821 = vpop.f32.mrb[0].mxu0
        %v822 = vadd.f32 0.0, %v821
        %823 = vdwg.mxu0
        %vm824 = vcmp.ge.f32.partialorder %v666, 0.5
        %vm825 = vcmp.ge.f32.partialorder %v668, 0.5
        %vm826 = vcmp.ge.f32.partialorder %v670, 0.5
        %vm827 = vcmp.ge.f32.partialorder %v672, 0.5
        %vm828 = vcmp.ge.f32.partialorder %v676, 0.5
        %vm829 = vcmp.ge.f32.partialorder %v678, 0.5
        %vm830 = vcmp.ge.f32.partialorder %v680, 0.5
        %vm831 = vcmp.ge.f32.partialorder %v682, 0.5
        %vm832 = vcmp.ge.f32.partialorder %v686, 0.5
        %vm833 = vcmp.ge.f32.partialorder %v688, 0.5
        %vm834 = vcmp.ge.f32.partialorder %v690, 0.5
        %vm835 = vcmp.ge.f32.partialorder %v692, 0.5
        %vm836 = vcmp.ge.f32.partialorder %v696, 0.5
        %vm837 = vcmp.ge.f32.partialorder %v698, 0.5
        %vm838 = vcmp.ge.f32.partialorder %v700, 0.5
        %vm839 = vcmp.ge.f32.partialorder %v702, 0.5
        %vm840 = vcmp.ge.f32.partialorder %v706, 0.5
        %vm841 = vcmp.ge.f32.partialorder %v708, 0.5
        %vm842 = vcmp.ge.f32.partialorder %v710, 0.5
        %vm843 = vcmp.ge.f32.partialorder %v712, 0.5
        %vm844 = vcmp.ge.f32.partialorder %v716, 0.5
        %vm845 = vcmp.ge.f32.partialorder %v718, 0.5
        %vm846 = vcmp.ge.f32.partialorder %v720, 0.5
        %vm847 = vcmp.ge.f32.partialorder %v722, 0.5
        %vm848 = vcmp.ge.f32.partialorder %v726, 0.5
        %vm849 = vcmp.ge.f32.partialorder %v728, 0.5
        %vm850 = vcmp.ge.f32.partialorder %v730, 0.5
        %vm851 = vcmp.ge.f32.partialorder %v732, 0.5
        %vm852 = vcmp.ge.f32.partialorder %v736, 0.5
        %vm853 = vcmp.ge.f32.partialorder %v738, 0.5
        %vm854 = vcmp.ge.f32.partialorder %v740, 0.5
        %vm855 = vcmp.ge.f32.partialorder %v742, 0.5
        %vm856 = vcmp.ge.f32.partialorder %v746, 0.5
        %vm857 = vcmp.ge.f32.partialorder %v748, 0.5
        %vm858 = vcmp.ge.f32.partialorder %v750, 0.5
        %vm859 = vcmp.ge.f32.partialorder %v752, 0.5
        %vm860 = vcmp.ge.f32.partialorder %v756, 0.5
        %vm861 = vcmp.ge.f32.partialorder %v758, 0.5
        %vm862 = vcmp.ge.f32.partialorder %v760, 0.5
        %vm863 = vcmp.ge.f32.partialorder %v762, 0.5
        %vm864 = vcmp.ge.f32.partialorder %v766, 0.5
        %vm865 = vcmp.ge.f32.partialorder %v768, 0.5
        %vm866 = vcmp.ge.f32.partialorder %v770, 0.5
        %vm867 = vcmp.ge.f32.partialorder %v772, 0.5
        %vm868 = vcmp.ge.f32.partialorder %v776, 0.5
        %vm869 = vcmp.ge.f32.partialorder %v778, 0.5
        %vm870 = vcmp.ge.f32.partialorder %v780, 0.5
        %vm871 = vcmp.ge.f32.partialorder %v782, 0.5
        %vm872 = vcmp.ge.f32.partialorder %v786, 0.5
        %vm873 = vcmp.ge.f32.partialorder %v788, 0.5
        %vm874 = vcmp.ge.f32.partialorder %v790, 0.5
        %vm875 = vcmp.ge.f32.partialorder %v792, 0.5
        %vm876 = vcmp.ge.f32.partialorder %v796, 0.5
        %vm877 = vcmp.ge.f32.partialorder %v798, 0.5
        %vm878 = vcmp.ge.f32.partialorder %v800, 0.5
        %vm879 = vcmp.ge.f32.partialorder %v802, 0.5
        %vm880 = vcmp.ge.f32.partialorder %v806, 0.5
        %vm881 = vcmp.ge.f32.partialorder %v808, 0.5
        %vm882 = vcmp.ge.f32.partialorder %v810, 0.5
        %vm883 = vcmp.ge.f32.partialorder %v812, 0.5
        %vm884 = vcmp.ge.f32.partialorder %v816, 0.5
        %vm885 = vcmp.ge.f32.partialorder %v818, 0.5
        %vm886 = vcmp.ge.f32.partialorder %v820, 0.5
        %vm887 = vcmp.ge.f32.partialorder %v822, 0.5
        %v888 = vsel %vm824, 1, 0
        %v889 = vsel %vm825, 1, 0
        %v890 = vsel %vm826, 1, 0
        %v891 = vsel %vm827, 1, 0
        %v892 = vsel %vm828, 1, 0
        %v893 = vsel %vm829, 1, 0
        %v894 = vsel %vm830, 1, 0
        %v895 = vsel %vm831, 1, 0
        %v896 = vsel %vm832, 1, 0
        %v897 = vsel %vm833, 1, 0
        %v898 = vsel %vm834, 1, 0
        %v899 = vsel %vm835, 1, 0
        %v900 = vsel %vm836, 1, 0
        %v901 = vsel %vm837, 1, 0
        %v902 = vsel %vm838, 1, 0
        %v903 = vsel %vm839, 1, 0
        %v904 = vsel %vm840, 1, 0
        %v905 = vsel %vm841, 1, 0
        %v906 = vsel %vm842, 1, 0
        %v907 = vsel %vm843, 1, 0
        %v908 = vsel %vm844, 1, 0
        %v909 = vsel %vm845, 1, 0
        %v910 = vsel %vm846, 1, 0
        %v911 = vsel %vm847, 1, 0
        %v912 = vsel %vm848, 1, 0
        %v913 = vsel %vm849, 1, 0
        %v914 = vsel %vm850, 1, 0
        %v915 = vsel %vm851, 1, 0
        %v916 = vsel %vm852, 1, 0
        %v917 = vsel %vm853, 1, 0
        %v918 = vsel %vm854, 1, 0
        %v919 = vsel %vm855, 1, 0
        %v920 = vsel %vm856, 1, 0
        %v921 = vsel %vm857, 1, 0
        %v922 = vsel %vm858, 1, 0
        %v923 = vsel %vm859, 1, 0
        %v924 = vsel %vm860, 1, 0
        %v925 = vsel %vm861, 1, 0
        %v926 = vsel %vm862, 1, 0
        %v927 = vsel %vm863, 1, 0
        %v928 = vsel %vm864, 1, 0
        %v929 = vsel %vm865, 1, 0
        %v930 = vsel %vm866, 1, 0
        %v931 = vsel %vm867, 1, 0
        %v932 = vsel %vm868, 1, 0
        %v933 = vsel %vm869, 1, 0
        %v934 = vsel %vm870, 1, 0
        %v935 = vsel %vm871, 1, 0
        %v936 = vsel %vm872, 1, 0
        %v937 = vsel %vm873, 1, 0
        %v938 = vsel %vm874, 1, 0
        %v939 = vsel %vm875, 1, 0
        %v940 = vsel %vm876, 1, 0
        %v941 = vsel %vm877, 1, 0
        %v942 = vsel %vm878, 1, 0
        %v943 = vsel %vm879, 1, 0
        %v944 = vsel %vm880, 1, 0
        %v945 = vsel %vm881, 1, 0
        %v946 = vsel %vm882, 1, 0
        %v947 = vsel %vm883, 1, 0
        %v948 = vsel %vm884, 1, 0
        %v949 = vsel %vm885, 1, 0
        %v950 = vsel %vm886, 1, 0
        %v951 = vsel %vm887, 1, 0
        %v952 = vcvt.s32.f32 %v888
        %v953 = vcvt.s32.f32 %v889
        %v954 = vcvt.s32.f32 %v890
        %v955 = vcvt.s32.f32 %v891
        %v956 = vcvt.s32.f32 %v892
        %v957 = vcvt.s32.f32 %v893
        %v958 = vcvt.s32.f32 %v894
        %v959 = vcvt.s32.f32 %v895
        %v960 = vcvt.s32.f32 %v896
        %v961 = vcvt.s32.f32 %v897
        %v962 = vcvt.s32.f32 %v898
        %v963 = vcvt.s32.f32 %v899
        %v964 = vcvt.s32.f32 %v900
        %v965 = vcvt.s32.f32 %v901
        %v966 = vcvt.s32.f32 %v902
        %v967 = vcvt.s32.f32 %v903
        %v968 = vcvt.s32.f32 %v904
        %v969 = vcvt.s32.f32 %v905
        %v970 = vcvt.s32.f32 %v906
        %v971 = vcvt.s32.f32 %v907
        %v972 = vcvt.s32.f32 %v908
        %v973 = vcvt.s32.f32 %v909
        %v974 = vcvt.s32.f32 %v910
        %v975 = vcvt.s32.f32 %v911
        %v976 = vcvt.s32.f32 %v912
        %v977 = vcvt.s32.f32 %v913
        %v978 = vcvt.s32.f32 %v914
        %v979 = vcvt.s32.f32 %v915
        %v980 = vcvt.s32.f32 %v916
        %v981 = vcvt.s32.f32 %v917
        %v982 = vcvt.s32.f32 %v918
        %v983 = vcvt.s32.f32 %v919
        %v984 = vcvt.s32.f32 %v920
        %v985 = vcvt.s32.f32 %v921
        %v986 = vcvt.s32.f32 %v922
        %v987 = vcvt.s32.f32 %v923
        %v988 = vcvt.s32.f32 %v924
        %v989 = vcvt.s32.f32 %v925
        %v990 = vcvt.s32.f32 %v926
        %v991 = vcvt.s32.f32 %v927
        %v992 = vcvt.s32.f32 %v928
        %v993 = vcvt.s32.f32 %v929
        %v994 = vcvt.s32.f32 %v930
        %v995 = vcvt.s32.f32 %v931
        %v996 = vcvt.s32.f32 %v932
        %v997 = vcvt.s32.f32 %v933
        %v998 = vcvt.s32.f32 %v934
        %v999 = vcvt.s32.f32 %v935
        %v1000 = vcvt.s32.f32 %v936
        %v1001 = vcvt.s32.f32 %v937
        %v1002 = vcvt.s32.f32 %v938
        %v1003 = vcvt.s32.f32 %v939
        %v1004 = vcvt.s32.f32 %v940
        %v1005 = vcvt.s32.f32 %v941
        %v1006 = vcvt.s32.f32 %v942
        %v1007 = vcvt.s32.f32 %v943
        %v1008 = vcvt.s32.f32 %v944
        %v1009 = vcvt.s32.f32 %v945
        %v1010 = vcvt.s32.f32 %v946
        %v1011 = vcvt.s32.f32 %v947
        %v1012 = vcvt.s32.f32 %v948
        %v1013 = vcvt.s32.f32 %v949
        %v1014 = vcvt.s32.f32 %v950
        %v1015 = vcvt.s32.f32 %v951
        %1016 = vst [vmem:[%s236] sm:$0xff] %v952
        %1017 = vst [vmem:[%s236 + $0x8] sm:$0xff] %v953
        %1018 = vst [vmem:[%s236 + $0x10] sm:$0xff] %v954
        %1019 = vst [vmem:[%s236 + $0x18] sm:$0xff] %v955
        %1020 = vst [vmem:[%s236 + $0x20] sm:$0xff] %v956
        %1021 = vst [vmem:[%s236 + $0x28] sm:$0xff] %v957
        %1022 = vst [vmem:[%s236 + $0x30] sm:$0xff] %v958
        %1023 = vst [vmem:[%s236 + $0x38] sm:$0xff] %v959
        %1024 = vst [vmem:[%s236 + $0x40] sm:$0xff] %v960
        %1025 = vst [vmem:[%s236 + $0x48] sm:$0xff] %v961
        %1026 = vst [vmem:[%s236 + $0x50] sm:$0xff] %v962
        %1027 = vst [vmem:[%s236 + $0x58] sm:$0xff] %v963
        %1028 = vst [vmem:[%s236 + $0x60] sm:$0xff] %v964
        %1029 = vst [vmem:[%s236 + $0x68] sm:$0xff] %v965
        %1030 = vst [vmem:[%s236 + $0x70] sm:$0xff] %v966
        %1031 = vst [vmem:[%s236 + $0x78] sm:$0xff] %v967
        %1032 = vst [vmem:[%s236 + $0x80] sm:$0xff] %v968
        %1033 = vst [vmem:[%s236 + $0x88] sm:$0xff] %v969
        %1034 = vst [vmem:[%s236 + $0x90] sm:$0xff] %v970
        %1035 = vst [vmem:[%s236 + $0x98] sm:$0xff] %v971
        %1036 = vst [vmem:[%s236 + $0xa0] sm:$0xff] %v972
        %1037 = vst [vmem:[%s236 + $0xa8] sm:$0xff] %v973
        %1038 = vst [vmem:[%s236 + $0xb0] sm:$0xff] %v974
        %1039 = vst [vmem:[%s236 + $0xb8] sm:$0xff] %v975
        %1040 = vst [vmem:[%s236 + $0xc0] sm:$0xff] %v976
        %1041 = vst [vmem:[%s236 + $0xc8] sm:$0xff] %v977
        %1042 = vst [vmem:[%s236 + $0xd0] sm:$0xff] %v978
        %1043 = vst [vmem:[%s236 + $0xd8] sm:$0xff] %v979
        %1044 = vst [vmem:[%s236 + $0xe0] sm:$0xff] %v980
        %1045 = vst [vmem:[%s236 + $0xe8] sm:$0xff] %v981
        %1046 = vst [vmem:[%s236 + $0xf0] sm:$0xff] %v982
        %1047 = vst [vmem:[%s236 + $0xf8] sm:$0xff] %v983
        %1048 = vst [vmem:[%s236 + $0x100] sm:$0xff] %v984
        %1049 = vst [vmem:[%s236 + $0x108] sm:$0xff] %v985
        %1050 = vst [vmem:[%s236 + $0x110] sm:$0xff] %v986
        %1051 = vst [vmem:[%s236 + $0x118] sm:$0xff] %v987
        %1052 = vst [vmem:[%s236 + $0x120] sm:$0xff] %v988
        %1053 = vst [vmem:[%s236 + $0x128] sm:$0xff] %v989
        %1054 = vst [vmem:[%s236 + $0x130] sm:$0xff] %v990
        %1055 = vst [vmem:[%s236 + $0x138] sm:$0xff] %v991
        %1056 = vst [vmem:[%s236 + $0x140] sm:$0xff] %v992
        %1057 = vst [vmem:[%s236 + $0x148] sm:$0xff] %v993
        %1058 = vst [vmem:[%s236 + $0x150] sm:$0xff] %v994
        %1059 = vst [vmem:[%s236 + $0x158] sm:$0xff] %v995
        %1060 = vst [vmem:[%s236 + $0x160] sm:$0xff] %v996
        %1061 = vst [vmem:[%s236 + $0x168] sm:$0xff] %v997
        %1062 = vst [vmem:[%s236 + $0x170] sm:$0xff] %v998
        %1063 = vst [vmem:[%s236 + $0x178] sm:$0xff] %v999
        %1064 = vst [vmem:[%s236 + $0x180] sm:$0xff] %v1000
        %1065 = vst [vmem:[%s236 + $0x188] sm:$0xff] %v1001
        %1066 = vst [vmem:[%s236 + $0x190] sm:$0xff] %v1002
        %1067 = vst [vmem:[%s236 + $0x198] sm:$0xff] %v1003
        %1068 = vst [vmem:[%s236 + $0x1a0] sm:$0xff] %v1004
        %1069 = vst [vmem:[%s236 + $0x1a8] sm:$0xff] %v1005
        %1070 = vst [vmem:[%s236 + $0x1b0] sm:$0xff] %v1006
        %1071 = vst [vmem:[%s236 + $0x1b8] sm:$0xff] %v1007
        %1072 = vst [vmem:[%s236 + $0x1c0] sm:$0xff] %v1008
        %1073 = vst [vmem:[%s236 + $0x1c8] sm:$0xff] %v1009
        %1074 = vst [vmem:[%s236 + $0x1d0] sm:$0xff] %v1010
        %1075 = vst [vmem:[%s236 + $0x1d8] sm:$0xff] %v1011
        %1076 = vst [vmem:[%s236 + $0x1e0] sm:$0xff] %v1012
        %1077 = vst [vmem:[%s236 + $0x1e8] sm:$0xff] %v1013
        %1078 = vst [vmem:[%s236 + $0x1f0] sm:$0xff] %v1014
        %1079 = vst [vmem:[%s236 + $0x1f8] sm:$0xff] %v1015
        %v1080 = vpack.c.bf16 %v954, %v952
        %v1081 = vpack.c.bf16 %v955, %v953
        %v1082 = vpack.c.bf16 %v958, %v956
        %v1083 = vpack.c.bf16 %v959, %v957
        %v1084 = vpack.c.bf16 %v962, %v960
        %v1085 = vpack.c.bf16 %v963, %v961
        %v1086 = vpack.c.bf16 %v966, %v964
        %v1087 = vpack.c.bf16 %v967, %v965
        %v1088 = vpack.c.bf16 %v970, %v968
        %v1089 = vpack.c.bf16 %v971, %v969
        %v1090 = vpack.c.bf16 %v974, %v972
        %v1091 = vpack.c.bf16 %v975, %v973
        %v1092 = vpack.c.bf16 %v978, %v976
        %v1093 = vpack.c.bf16 %v979, %v977
        %v1094 = vpack.c.bf16 %v982, %v980
        %v1095 = vpack.c.bf16 %v983, %v981
        %v1096 = vpack.c.bf16 %v986, %v984
        %v1097 = vpack.c.bf16 %v987, %v985
        %v1098 = vpack.c.bf16 %v990, %v988
        %v1099 = vpack.c.bf16 %v991, %v989
        %v1100 = vpack.c.bf16 %v994, %v992
        %v1101 = vpack.c.bf16 %v995, %v993
        %v1102 = vpack.c.bf16 %v998, %v996
        %v1103 = vpack.c.bf16 %v999, %v997
        %v1104 = vpack.c.bf16 %v1002, %v1000
        %v1105 = vpack.c.bf16 %v1003, %v1001
        %v1106 = vpack.c.bf16 %v1006, %v1004
        %v1107 = vpack.c.bf16 %v1007, %v1005
        %v1108 = vpack.c.bf16 %v1010, %v1008
        %v1109 = vpack.c.bf16 %v1011, %v1009
        %v1110 = vpack.c.bf16 %v1014, %v1012
        %v1111 = vpack.c.bf16 %v1015, %v1013
        %1112 = vxpose.xlu0.c.b16.start [1/8] %v1080, 128
        %1113 = vxpose.xlu0.c.b16.cont [2/8] %v1082, 128
        %1114 = vxpose.xlu0.c.b16.cont [3/8] %v1084, 128
        %1115 = vxpose.xlu0.c.b16.cont [4/8] %v1086, 128
        %1116 = vxpose.xlu0.c.b16.cont [5/8] %v1088, 128
        %1117 = vxpose.xlu0.c.b16.cont [6/8] %v1090, 128
        %1118 = vxpose.xlu0.c.b16.cont [7/8] %v1092, 128
        %1119 = vxpose.xlu0.c.b16.end [8/8] %v1094, 128
        %v1120 = vpop.trf.xlu0
        %v1121 = vpop.trf.xlu0
        %v1122 = vpop.trf.xlu0
        %v1123 = vpop.trf.xlu0
        %v1124 = vpop.trf.xlu0
        %v1125 = vpop.trf.xlu0
        %v1126 = vpop.trf.xlu0
        %v1127 = vpop.trf.xlu0
        %1128 = vxpose.xlu0.c.b16.start [1/8] %v1081, 128
        %1129 = vxpose.xlu0.c.b16.cont [2/8] %v1083, 128
        %1130 = vxpose.xlu0.c.b16.cont [3/8] %v1085, 128
        %1131 = vxpose.xlu0.c.b16.cont [4/8] %v1087, 128
        %1132 = vxpose.xlu0.c.b16.cont [5/8] %v1089, 128
        %1133 = vxpose.xlu0.c.b16.cont [6/8] %v1091, 128
        %1134 = vxpose.xlu0.c.b16.cont [7/8] %v1093, 128
        %1135 = vxpose.xlu0.c.b16.end [8/8] %v1095, 128
        %v1136 = vpop.trf.xlu0
        %v1137 = vpop.trf.xlu0
        %v1138 = vpop.trf.xlu0
        %v1139 = vpop.trf.xlu0
        %v1140 = vpop.trf.xlu0
        %v1141 = vpop.trf.xlu0
        %v1142 = vpop.trf.xlu0
        %v1143 = vpop.trf.xlu0
        %1144 = vxpose.xlu0.c.b16.start [1/8] %v1096, 128
        %1145 = vxpose.xlu0.c.b16.cont [2/8] %v1098, 128
        %1146 = vxpose.xlu0.c.b16.cont [3/8] %v1100, 128
        %1147 = vxpose.xlu0.c.b16.cont [4/8] %v1102, 128
        %1148 = vxpose.xlu0.c.b16.cont [5/8] %v1104, 128
        %1149 = vxpose.xlu0.c.b16.cont [6/8] %v1106, 128
        %1150 = vxpose.xlu0.c.b16.cont [7/8] %v1108, 128
        %1151 = vxpose.xlu0.c.b16.end [8/8] %v1110, 128
        %v1152 = vpop.trf.xlu0
        %v1153 = vpop.trf.xlu0
        %v1154 = vpop.trf.xlu0
        %v1155 = vpop.trf.xlu0
        %v1156 = vpop.trf.xlu0
        %v1157 = vpop.trf.xlu0
        %v1158 = vpop.trf.xlu0
        %v1159 = vpop.trf.xlu0
        %1160 = vxpose.xlu0.c.b16.start [1/8] %v1097, 128
        %1161 = vxpose.xlu0.c.b16.cont [2/8] %v1099, 128
        %1162 = vxpose.xlu0.c.b16.cont [3/8] %v1101, 128
        %1163 = vxpose.xlu0.c.b16.cont [4/8] %v1103, 128
        %1164 = vxpose.xlu0.c.b16.cont [5/8] %v1105, 128
        %1165 = vxpose.xlu0.c.b16.cont [6/8] %v1107, 128
        %1166 = vxpose.xlu0.c.b16.cont [7/8] %v1109, 128
        %1167 = vxpose.xlu0.c.b16.end [8/8] %v1111, 128
        %v1168 = vpop.trf.xlu0
        %v1169 = vpop.trf.xlu0
        %v1170 = vpop.trf.xlu0
        %v1171 = vpop.trf.xlu0
        %v1172 = vpop.trf.xlu0
        %v1173 = vpop.trf.xlu0
        %v1174 = vpop.trf.xlu0
        %v1175 = vpop.trf.xlu0
        %1176 = vmatprep.subr.bf16.mxu0 %v408
        %1177 = vmatpush1.bf16.msra.mxu0 %v407
        %1178 = vmatprep.subr.bf16.mxu0 %v410
        %1179 = vmatpush1.bf16.msra.mxu0 %v409
        %1180 = vmatprep.subr.bf16.mxu0 %v412
        %1181 = vmatpush1.bf16.msra.mxu0 %v411
        %1182 = vmatprep.subr.bf16.mxu0 %v414
        %1183 = vmatpush1.bf16.msra.mxu0 %v413
        %1184 = vmatprep.subr.bf16.mxu0 %v416
        %1185 = vmatpush1.bf16.msra.mxu0 %v415
        %1186 = vmatprep.subr.bf16.mxu0 %v418
        %1187 = vmatpush1.bf16.msra.mxu0 %v417
        %1188 = vmatprep.subr.bf16.mxu0 %v420
        %1189 = vmatpush1.bf16.msra.mxu0 %v419
        %1190 = vmatprep.subr.bf16.mxu0 %v422
        %1191 = vmatpush1.bf16.msra.mxu0 %v421
        %1192 = vmatprep.subr.bf16.mxu0 %v424
        %1193 = vmatpush1.bf16.msra.mxu0 %v423
        %1194 = vmatprep.subr.bf16.mxu0 %v426
        %1195 = vmatpush1.bf16.msra.mxu0 %v425
        %1196 = vmatprep.subr.bf16.mxu0 %v428
        %1197 = vmatpush1.bf16.msra.mxu0 %v427
        %1198 = vmatprep.subr.bf16.mxu0 %v430
        %1199 = vmatpush1.bf16.msra.mxu0 %v429
        %1200 = vmatprep.subr.bf16.mxu0 %v432
        %1201 = vmatpush1.bf16.msra.mxu0 %v431
        %1202 = vmatprep.subr.bf16.mxu0 %v434
        %1203 = vmatpush1.bf16.msra.mxu0 %v433
        %1204 = vmatprep.subr.bf16.mxu0 %v436
        %1205 = vmatpush1.bf16.msra.mxu0 %v435
        %1206 = vmatprep.subr.bf16.mxu0 %v438
        %1207 = vmatpush1.bf16.msra.mxu0 %v437
        %1208 = vmatprep.mubr.bf16.mxu0 %v1152
        %1209 = vmatmul.mubr.bf16.gmra.mrb[0].mxu0 %v1120
        %v1210 = vpop.f32.mrb[0].mxu0
        %v1211 = vadd.f32 0.0, %v1210
        %v1212 = vpop.f32.mrb[0].mxu0
        %v1213 = vadd.f32 0.0, %v1212
        %v1214 = vpop.f32.mrb[0].mxu0
        %v1215 = vadd.f32 0.0, %v1214
        %v1216 = vpop.f32.mrb[0].mxu0
        %v1217 = vadd.f32 0.0, %v1216
        %1218 = vmatprep.mubr.bf16.mxu0 %v1153
        %1219 = vmatmul.mubr.bf16.gmra.mrb[0].mxu0 %v1121
        %v1220 = vpop.f32.mrb[0].mxu0
        %v1221 = vadd.f32 0.0, %v1220
        %v1222 = vpop.f32.mrb[0].mxu0
        %v1223 = vadd.f32 0.0, %v1222
        %v1224 = vpop.f32.mrb[0].mxu0
        %v1225 = vadd.f32 0.0, %v1224
        %v1226 = vpop.f32.mrb[0].mxu0
        %v1227 = vadd.f32 0.0, %v1226
        %1228 = vmatprep.mubr.bf16.mxu0 %v1154
        %1229 = vmatmul.mubr.bf16.gmra.mrb[0].mxu0 %v1122
        %v1230 = vpop.f32.mrb[0].mxu0
        %v1231 = vadd.f32 0.0, %v1230
        %v1232 = vpop.f32.mrb[0].mxu0
        %v1233 = vadd.f32 0.0, %v1232
        %v1234 = vpop.f32.mrb[0].mxu0
        %v1235 = vadd.f32 0.0, %v1234
        %v1236 = vpop.f32.mrb[0].mxu0
        %v1237 = vadd.f32 0.0, %v1236
        %1238 = vmatprep.mubr.bf16.mxu0 %v1155
        %1239 = vmatmul.mubr.bf16.gmra.mrb[0].mxu0 %v1123
        %v1240 = vpop.f32.mrb[0].mxu0
        %v1241 = vadd.f32 0.0, %v1240
        %v1242 = vpop.f32.mrb[0].mxu0
        %v1243 = vadd.f32 0.0, %v1242
        %v1244 = vpop.f32.mrb[0].mxu0
        %v1245 = vadd.f32 0.0, %v1244
        %v1246 = vpop.f32.mrb[0].mxu0
        %v1247 = vadd.f32 0.0, %v1246
        %1248 = vmatprep.mubr.bf16.mxu0 %v1156
        %1249 = vmatmul.mubr.bf16.gmra.mrb[0].mxu0 %v1124
        %v1250 = vpop.f32.mrb[0].mxu0
        %v1251 = vadd.f32 0.0, %v1250
        %v1252 = vpop.f32.mrb[0].mxu0
        %v1253 = vadd.f32 0.0, %v1252
        %v1254 = vpop.f32.mrb[0].mxu0
        %v1255 = vadd.f32 0.0, %v1254
        %v1256 = vpop.f32.mrb[0].mxu0
        %v1257 = vadd.f32 0.0, %v1256
        %1258 = vmatprep.mubr.bf16.mxu0 %v1157
        %1259 = vmatmul.mubr.bf16.gmra.mrb[0].mxu0 %v1125
        %v1260 = vpop.f32.mrb[0].mxu0
        %v1261 = vadd.f32 0.0, %v1260
        %v1262 = vpop.f32.mrb[0].mxu0
        %v1263 = vadd.f32 0.0, %v1262
        %v1264 = vpop.f32.mrb[0].mxu0
        %v1265 = vadd.f32 0.0, %v1264
        %v1266 = vpop.f32.mrb[0].mxu0
        %v1267 = vadd.f32 0.0, %v1266
        %1268 = vmatprep.mubr.bf16.mxu0 %v1158
        %1269 = vmatmul.mubr.bf16.gmra.mrb[0].mxu0 %v1126
        %v1270 = vpop.f32.mrb[0].mxu0
        %v1271 = vadd.f32 0.0, %v1270
        %v1272 = vpop.f32.mrb[0].mxu0
        %v1273 = vadd.f32 0.0, %v1272
        %v1274 = vpop.f32.mrb[0].mxu0
        %v1275 = vadd.f32 0.0, %v1274
        %v1276 = vpop.f32.mrb[0].mxu0
        %v1277 = vadd.f32 0.0, %v1276
        %1278 = vmatprep.mubr.bf16.mxu0 %v1159
        %1279 = vmatmul.mubr.bf16.gmra.mrb[0].mxu0 %v1127
        %v1280 = vpop.f32.mrb[0].mxu0
        %v1281 = vadd.f32 0.0, %v1280
        %v1282 = vpop.f32.mrb[0].mxu0
        %v1283 = vadd.f32 0.0, %v1282
        %v1284 = vpop.f32.mrb[0].mxu0
        %v1285 = vadd.f32 0.0, %v1284
        %v1286 = vpop.f32.mrb[0].mxu0
        %v1287 = vadd.f32 0.0, %v1286
        %1288 = vmatprep.mubr.bf16.mxu0 %v1168
        %1289 = vmatmul.mubr.bf16.gmra.mrb[0].mxu0 %v1136
        %v1290 = vpop.f32.mrb[0].mxu0
        %v1291 = vadd.f32 0.0, %v1290
        %v1292 = vpop.f32.mrb[0].mxu0
        %v1293 = vadd.f32 0.0, %v1292
        %v1294 = vpop.f32.mrb[0].mxu0
        %v1295 = vadd.f32 0.0, %v1294
        %v1296 = vpop.f32.mrb[0].mxu0
        %v1297 = vadd.f32 0.0, %v1296
        %1298 = vmatprep.mubr.bf16.mxu0 %v1169
        %1299 = vmatmul.mubr.bf16.gmra.mrb[0].mxu0 %v1137
        %v1300 = vpop.f32.mrb[0].mxu0
        %v1301 = vadd.f32 0.0, %v1300
        %v1302 = vpop.f32.mrb[0].mxu0
        %v1303 = vadd.f32 0.0, %v1302
        %v1304 = vpop.f32.mrb[0].mxu0
        %v1305 = vadd.f32 0.0, %v1304
        %v1306 = vpop.f32.mrb[0].mxu0
        %v1307 = vadd.f32 0.0, %v1306
        %1308 = vmatprep.mubr.bf16.mxu0 %v1170
        %1309 = vmatmul.mubr.bf16.gmra.mrb[0].mxu0 %v1138
        %v1310 = vpop.f32.mrb[0].mxu0
        %v1311 = vadd.f32 0.0, %v1310
        %v1312 = vpop.f32.mrb[0].mxu0
        %v1313 = vadd.f32 0.0, %v1312
        %v1314 = vpop.f32.mrb[0].mxu0
        %v1315 = vadd.f32 0.0, %v1314
        %v1316 = vpop.f32.mrb[0].mxu0
        %v1317 = vadd.f32 0.0, %v1316
        %1318 = vmatprep.mubr.bf16.mxu0 %v1171
        %1319 = vmatmul.mubr.bf16.gmra.mrb[0].mxu0 %v1139
        %v1320 = vpop.f32.mrb[0].mxu0
        %v1321 = vadd.f32 0.0, %v1320
        %v1322 = vpop.f32.mrb[0].mxu0
        %v1323 = vadd.f32 0.0, %v1322
        %v1324 = vpop.f32.mrb[0].mxu0
        %v1325 = vadd.f32 0.0, %v1324
        %v1326 = vpop.f32.mrb[0].mxu0
        %v1327 = vadd.f32 0.0, %v1326
        %1328 = vmatprep.mubr.bf16.mxu0 %v1172
        %1329 = vmatmul.mubr.bf16.gmra.mrb[0].mxu0 %v1140
        %v1330 = vpop.f32.mrb[0].mxu0
        %v1331 = vadd.f32 0.0, %v1330
        %v1332 = vpop.f32.mrb[0].mxu0
        %v1333 = vadd.f32 0.0, %v1332
        %v1334 = vpop.f32.mrb[0].mxu0
        %v1335 = vadd.f32 0.0, %v1334
        %v1336 = vpop.f32.mrb[0].mxu0
        %v1337 = vadd.f32 0.0, %v1336
        %1338 = vmatprep.mubr.bf16.mxu0 %v1173
        %1339 = vmatmul.mubr.bf16.gmra.mrb[0].mxu0 %v1141
        %v1340 = vpop.f32.mrb[0].mxu0
        %v1341 = vadd.f32 0.0, %v1340
        %v1342 = vpop.f32.mrb[0].mxu0
        %v1343 = vadd.f32 0.0, %v1342
        %v1344 = vpop.f32.mrb[0].mxu0
        %v1345 = vadd.f32 0.0, %v1344
        %v1346 = vpop.f32.mrb[0].mxu0
        %v1347 = vadd.f32 0.0, %v1346
        %1348 = vmatprep.mubr.bf16.mxu0 %v1174
        %1349 = vmatmul.mubr.bf16.gmra.mrb[0].mxu0 %v1142
        %v1350 = vpop.f32.mrb[0].mxu0
        %v1351 = vadd.f32 0.0, %v1350
        %v1352 = vpop.f32.mrb[0].mxu0
        %v1353 = vadd.f32 0.0, %v1352
        %v1354 = vpop.f32.mrb[0].mxu0
        %v1355 = vadd.f32 0.0, %v1354
        %v1356 = vpop.f32.mrb[0].mxu0
        %v1357 = vadd.f32 0.0, %v1356
        %1358 = vmatprep.mubr.bf16.mxu0 %v1175
        %1359 = vmatmul.mubr.bf16.gmra.mrb[0].mxu0 %v1143
        %v1360 = vpop.f32.mrb[0].mxu0
        %v1361 = vadd.f32 0.0, %v1360
        %v1362 = vpop.f32.mrb[0].mxu0
        %v1363 = vadd.f32 0.0, %v1362
        %v1364 = vpop.f32.mrb[0].mxu0
        %v1365 = vadd.f32 0.0, %v1364
        %v1366 = vpop.f32.mrb[0].mxu0
        %v1367 = vadd.f32 0.0, %v1366
        %1368 = vdwg.mxu0
        %s1369 = sld [smem:[#allocation2]]
        %v1370 = vstv %s1369
        %v1371 = vmul.f32 %v1211, %v1370
        %v1372 = vmul.f32 %v1213, %v1370
        %v1373 = vmul.f32 %v1215, %v1370
        %v1374 = vmul.f32 %v1217, %v1370
        %v1375 = vmul.f32 %v1221, %v1370
        %v1376 = vmul.f32 %v1223, %v1370
        %v1377 = vmul.f32 %v1225, %v1370
        %v1378 = vmul.f32 %v1227, %v1370
        %v1379 = vmul.f32 %v1231, %v1370
        %v1380 = vmul.f32 %v1233, %v1370
        %v1381 = vmul.f32 %v1235, %v1370
        %v1382 = vmul.f32 %v1237, %v1370
        %v1383 = vmul.f32 %v1241, %v1370
        %v1384 = vmul.f32 %v1243, %v1370
        %v1385 = vmul.f32 %v1245, %v1370
        %v1386 = vmul.f32 %v1247, %v1370
        %v1387 = vmul.f32 %v1251, %v1370
        %v1388 = vmul.f32 %v1253, %v1370
        %v1389 = vmul.f32 %v1255, %v1370
        %v1390 = vmul.f32 %v1257, %v1370
        %v1391 = vmul.f32 %v1261, %v1370
        %v1392 = vmul.f32 %v1263, %v1370
        %v1393 = vmul.f32 %v1265, %v1370
        %v1394 = vmul.f32 %v1267, %v1370
        %v1395 = vmul.f32 %v1271, %v1370
        %v1396 = vmul.f32 %v1273, %v1370
        %v1397 = vmul.f32 %v1275, %v1370
        %v1398 = vmul.f32 %v1277, %v1370
        %v1399 = vmul.f32 %v1281, %v1370
        %v1400 = vmul.f32 %v1283, %v1370
        %v1401 = vmul.f32 %v1285, %v1370
        %v1402 = vmul.f32 %v1287, %v1370
        %v1403 = vmul.f32 %v1291, %v1370
        %v1404 = vmul.f32 %v1293, %v1370
        %v1405 = vmul.f32 %v1295, %v1370
        %v1406 = vmul.f32 %v1297, %v1370
        %v1407 = vmul.f32 %v1301, %v1370
        %v1408 = vmul.f32 %v1303, %v1370
        %v1409 = vmul.f32 %v1305, %v1370
        %v1410 = vmul.f32 %v1307, %v1370
        %v1411 = vmul.f32 %v1311, %v1370
        %v1412 = vmul.f32 %v1313, %v1370
        %v1413 = vmul.f32 %v1315, %v1370
        %v1414 = vmul.f32 %v1317, %v1370
        %v1415 = vmul.f32 %v1321, %v1370
        %v1416 = vmul.f32 %v1323, %v1370
        %v1417 = vmul.f32 %v1325, %v1370
        %v1418 = vmul.f32 %v1327, %v1370
        %v1419 = vmul.f32 %v1331, %v1370
        %v1420 = vmul.f32 %v1333, %v1370
        %v1421 = vmul.f32 %v1335, %v1370
        %v1422 = vmul.f32 %v1337, %v1370
        %v1423 = vmul.f32 %v1341, %v1370
        %v1424 = vmul.f32 %v1343, %v1370
        %v1425 = vmul.f32 %v1345, %v1370
        %v1426 = vmul.f32 %v1347, %v1370
        %v1427 = vmul.f32 %v1351, %v1370
        %v1428 = vmul.f32 %v1353, %v1370
        %v1429 = vmul.f32 %v1355, %v1370
        %v1430 = vmul.f32 %v1357, %v1370
        %v1431 = vmul.f32 %v1361, %v1370
        %v1432 = vmul.f32 %v1363, %v1370
        %v1433 = vmul.f32 %v1365, %v1370
        %v1434 = vmul.f32 %v1367, %v1370
        %1435 = vst [vmem:[%s243] sm:$0xff] %v1371
        %1436 = vst [vmem:[%s243 + $0x8] sm:$0xff] %v1372
        %1437 = vst [vmem:[%s243 + $0x10] sm:$0xff] %v1373
        %1438 = vst [vmem:[%s243 + $0x18] sm:$0xff] %v1374
        %1439 = vst [vmem:[%s243 + $0x20] sm:$0xff] %v1375
        %1440 = vst [vmem:[%s243 + $0x28] sm:$0xff] %v1376
        %1441 = vst [vmem:[%s243 + $0x30] sm:$0xff] %v1377
        %1442 = vst [vmem:[%s243 + $0x38] sm:$0xff] %v1378
        %1443 = vst [vmem:[%s243 + $0x40] sm:$0xff] %v1379
        %1444 = vst [vmem:[%s243 + $0x48] sm:$0xff] %v1380
        %1445 = vst [vmem:[%s243 + $0x50] sm:$0xff] %v1381
        %1446 = vst [vmem:[%s243 + $0x58] sm:$0xff] %v1382
        %1447 = vst [vmem:[%s243 + $0x60] sm:$0xff] %v1383
        %1448 = vst [vmem:[%s243 + $0x68] sm:$0xff] %v1384
        %1449 = vst [vmem:[%s243 + $0x70] sm:$0xff] %v1385
        %1450 = vst [vmem:[%s243 + $0x78] sm:$0xff] %v1386
        %1451 = vst [vmem:[%s243 + $0x80] sm:$0xff] %v1387
        %1452 = vst [vmem:[%s243 + $0x88] sm:$0xff] %v1388
        %1453 = vst [vmem:[%s243 + $0x90] sm:$0xff] %v1389
        %1454 = vst [vmem:[%s243 + $0x98] sm:$0xff] %v1390
        %1455 = vst [vmem:[%s243 + $0xa0] sm:$0xff] %v1391
        %1456 = vst [vmem:[%s243 + $0xa8] sm:$0xff] %v1392
        %1457 = vst [vmem:[%s243 + $0xb0] sm:$0xff] %v1393
        %1458 = vst [vmem:[%s243 + $0xb8] sm:$0xff] %v1394
        %1459 = vst [vmem:[%s243 + $0xc0] sm:$0xff] %v1395
        %1460 = vst [vmem:[%s243 + $0xc8] sm:$0xff] %v1396
        %1461 = vst [vmem:[%s243 + $0xd0] sm:$0xff] %v1397
        %1462 = vst [vmem:[%s243 + $0xd8] sm:$0xff] %v1398
        %1463 = vst [vmem:[%s243 + $0xe0] sm:$0xff] %v1399
        %1464 = vst [vmem:[%s243 + $0xe8] sm:$0xff] %v1400
        %1465 = vst [vmem:[%s243 + $0xf0] sm:$0xff] %v1401
        %1466 = vst [vmem:[%s243 + $0xf8] sm:$0xff] %v1402
        %1467 = vst [vmem:[%s243 + $0x100] sm:$0xff] %v1403
        %1468 = vst [vmem:[%s243 + $0x108] sm:$0xff] %v1404
        %1469 = vst [vmem:[%s243 + $0x110] sm:$0xff] %v1405
        %1470 = vst [vmem:[%s243 + $0x118] sm:$0xff] %v1406
        %1471 = vst [vmem:[%s243 + $0x120] sm:$0xff] %v1407
        %1472 = vst [vmem:[%s243 + $0x128] sm:$0xff] %v1408
        %1473 = vst [vmem:[%s243 + $0x130] sm:$0xff] %v1409
        %1474 = vst [vmem:[%s243 + $0x138] sm:$0xff] %v1410
        %1475 = vst [vmem:[%s243 + $0x140] sm:$0xff] %v1411
        %1476 = vst [vmem:[%s243 + $0x148] sm:$0xff] %v1412
        %1477 = vst [vmem:[%s243 + $0x150] sm:$0xff] %v1413
        %1478 = vst [vmem:[%s243 + $0x158] sm:$0xff] %v1414
        %1479 = vst [vmem:[%s243 + $0x160] sm:$0xff] %v1415
        %1480 = vst [vmem:[%s243 + $0x168] sm:$0xff] %v1416
        %1481 = vst [vmem:[%s243 + $0x170] sm:$0xff] %v1417
        %1482 = vst [vmem:[%s243 + $0x178] sm:$0xff] %v1418
        %1483 = vst [vmem:[%s243 + $0x180] sm:$0xff] %v1419
        %1484 = vst [vmem:[%s243 + $0x188] sm:$0xff] %v1420
        %1485 = vst [vmem:[%s243 + $0x190] sm:$0xff] %v1421
        %1486 = vst [vmem:[%s243 + $0x198] sm:$0xff] %v1422
        %1487 = vst [vmem:[%s243 + $0x1a0] sm:$0xff] %v1423
        %1488 = vst [vmem:[%s243 + $0x1a8] sm:$0xff] %v1424
        %1489 = vst [vmem:[%s243 + $0x1b0] sm:$0xff] %v1425
        %1490 = vst [vmem:[%s243 + $0x1b8] sm:$0xff] %v1426
        %1491 = vst [vmem:[%s243 + $0x1c0] sm:$0xff] %v1427
        %1492 = vst [vmem:[%s243 + $0x1c8] sm:$0xff] %v1428
        %1493 = vst [vmem:[%s243 + $0x1d0] sm:$0xff] %v1429
        %1494 = vst [vmem:[%s243 + $0x1d8] sm:$0xff] %v1430
        %1495 = vst [vmem:[%s243 + $0x1e0] sm:$0xff] %v1431
        %1496 = vst [vmem:[%s243 + $0x1e8] sm:$0xff] %v1432
        %1497 = vst [vmem:[%s243 + $0x1f0] sm:$0xff] %v1433
        %1498 = vst [vmem:[%s243 + $0x1f8] sm:$0xff] %v1434
        %s1499 = sand.u32 %s103, 1
        %s1500 = scalar_lea.sflag [#allocation5], %s1499
        %s1501 = sand.u32 %s103, 1
        %s1502 = smul.addr %s1501, 512
        %s1503 = scalar_lea.vmem [#allocation8], %s1502
        %s1504 = sand.u32 %s129, 1
        %s1505 = scalar_lea.sflag [#allocation10], %s1504
        %s1506 = sand.u32 %s129, 1
        %s1507 = smul.addr %s1506, 512
        %s1508 = scalar_lea.vmem [#allocation9], %s1507
        // Predicated region
        $region41: #{tpu_custom_call.1} parent=31 // pred_check
          %p1509 = pneg %p113
        $region42: #{tpu_custom_call.1} parent=31 // pred_check_branch
          %1511 = sbr.rel (%p1509) target = $region44
        $region43: #{tpu_custom_call.1} parent=31 // pred_region
          %s1512 = smul.u32 2, %s27
          %s1514 = ssub.s32 8192, 8192
          %1515 = vsyncadd %s1500, %s1514
          %s1516 = smul.addr %s1512, 128
          %s1517 = scalar_lea.hbm %s3, %s1516
          %s1518 = sshll.u32 %s1503, 4
          %s1519 = int_to_ptr.vmem [resolvable:$true] %s1518
          %1524 = dma.vmem_to_hbm [thread:$0]  %s1519, 8192, %s1517, %s1500, 256, 512, 16
        $region44: #{tpu_custom_call.1} parent=31 // pred_fallthru
          _
        // Predicated region
        $region45: #{tpu_custom_call.1} parent=31 // pred_check
          %p1525 = pneg %p139
        $region46: #{tpu_custom_call.1} parent=31 // pred_check_branch
          %1527 = sbr.rel (%p1525) target = $region48
        $region47: #{tpu_custom_call.1} parent=31 // pred_region
          %s1528 = smul.u32 32, %s27
          %s1530 = ssub.s32 8192, 8192
          %1531 = vsyncadd %s1505, %s1530
          %s1532 = smul.addr %s1528, 2
          %s1533 = smul.addr %s1532, 128
          %s1534 = scalar_lea.hbm %s4, %s1533
          %s1535 = sshll.u32 %s1508, 4
          %s1536 = int_to_ptr.vmem [resolvable:$true] %s1535
          %1541 = dma.vmem_to_hbm [thread:$0]  %s1536, 8192, %s1534, %s1505, 256, 256, 16
        $region48: #{tpu_custom_call.1} parent=31 // pred_fallthru
          _
      $region32: #{tpu_custom_call.1} parent=5 // pred_fallthru
        _
      %p1542 = scmp.le.s32.totalorder 2, %s22
      // Predicated region
      $region49: #{tpu_custom_call.1} parent=5 // pred_check
        %p1543 = pneg %p1542
      $region50: #{tpu_custom_call.1} parent=5 // pred_check_branch
        %1545 = sbr.rel (%p1543) target = $region52
      $region51: #{tpu_custom_call.1} parent=5 // pred_region
        %s1546 = ssub.s32 %s22, 2
        // Predicated region
        $region53: #{tpu_custom_call.1} parent=51 // pred_check
          %p1547 = pneg %p119
        $region54: #{tpu_custom_call.1} parent=51 // pred_check_branch
          %1549 = sbr.rel (%p1547) target = $region56
        $region55: #{tpu_custom_call.1} parent=51 // pred_region
          %s1550 = sand.u32 %s104, 1
          %s1551 = scalar_lea.sflag [#allocation5], %s1550
          %s1552 = sand.u32 %s104, 1
          %s1553 = smul.addr %s1552, 512
          %s1554 = scalar_lea.vmem [#allocation8], %s1553
          %1555 = dma.done %s1551, 8192
        $region56: #{tpu_custom_call.1} parent=51 // pred_fallthru
          _
        // Predicated region
        $region57: #{tpu_custom_call.1} parent=51 // pred_check
          %p1556 = pneg %p145
        $region58: #{tpu_custom_call.1} parent=51 // pred_check_branch
          %1558 = sbr.rel (%p1556) target = $region60
        $region59: #{tpu_custom_call.1} parent=51 // pred_region
          %s1559 = sand.u32 %s130, 1
          %s1560 = scalar_lea.sflag [#allocation10], %s1559
          %s1561 = sand.u32 %s130, 1
          %s1562 = smul.addr %s1561, 512
          %s1563 = scalar_lea.vmem [#allocation9], %s1562
          %1564 = dma.done %s1560, 8192
        $region60: #{tpu_custom_call.1} parent=51 // pred_fallthru
          _
      $region52: #{tpu_custom_call.1} parent=5 // pred_fallthru
        _
    $region6: #{tpu_custom_call.1} parent=1 // loop_footer
      %s26 = sadd.s32 1, %s22
    $region7: #{tpu_custom_call.1} parent=1 // loop_footer_branch
      %21 = sbr.rel target = $region3
    $region8: #{tpu_custom_call.1} parent=1 // loop_exit
      _
    %1565 = vsyncpa [#allocation4], 1
    %s1566 = scalar_lea.sflag [#allocation4], 1
    %1567 = vsyncpa %s1566, 1
    %1568 = vsyncpa [#allocation7], 1
    %s1569 = scalar_lea.sflag [#allocation7], 1
    %1570 = vsyncpa %s1569, 1
    %1571 = vsyncpa [#allocation5], 1
    %s1572 = scalar_lea.sflag [#allocation5], 1
    %1573 = vsyncpa %s1572, 1
    %1574 = vsyncpa [#allocation10], 1
    %s1575 = scalar_lea.sflag [#allocation10], 1
    %1576 = vsyncpa %s1575, 1

</llo_original>
